<compile_context>
chip_gen: v7x
topology: tpu7x:2x2x1
jax: 0.10.0
libtpu: 0.0.40
codegen_flags: <defaults>
</compile_context>

<pallas_src>
import functools

import jax
import jax.numpy as jnp
from jax.experimental import pallas as pl
from jax.experimental.pallas import tpu as pltpu

EPS = 1e-5
LEAKINESS = 0.01
_VMEM = pl.BlockSpec(memory_space=pltpu.MemorySpace.VMEM)


# --------------------------------------------------------------------------
# Fused kernel builder (all shape/stride parameters are static Python ints)
# --------------------------------------------------------------------------
def _build_fused_kernel(n, h, w, cin, cout, stride):
    s = stride
    ho, wo = h // s, w // s
    m = n * ho * wo

    def phase_shift(k):
        # conv tap offset k-1 in input space -> (phase, shift) in output space
        off = k - 1
        p = off % s
        return p, (off - p) // s

    def kernel(xph_ref, hoi_ref, woi_ref, g1_ref, b1_ref, w1_ref,
               g2_ref, b2_ref, w2_ref, ws_ref, o_ref):
        ho_idx = hoi_ref[...]                     # (1, M) int32, output row index
        wo_idx = woi_ref[...]                     # (1, M) int32, output col index

        # ---- BN1 (batch statistics over all N*H*W positions) + LeakyReLU ----
        xs = [[xph_ref[p, q] for q in range(s)] for p in range(s)]   # (Cin, M) f32
        tot = None
        tot2 = None
        for p in range(s):
            for q in range(s):
                xv = xs[p][q]
                tot = xv if tot is None else tot + xv
                tot2 = xv * xv if tot2 is None else tot2 + xv * xv
        cnt = float(s * s * m)
        mean1 = jnp.sum(tot, axis=1, keepdims=True) / cnt            # (Cin, 1)
        var1 = jnp.sum(tot2, axis=1, keepdims=True) / cnt - mean1 * mean1
        scale1 = jax.lax.rsqrt(var1 + EPS) * g1_ref[...]             # (Cin, 1)
        shift1 = b1_ref[...] - mean1 * scale1
        a1 = [[None] * s for _ in range(s)]
        for p in range(s):
            for q in range(s):
                v = xs[p][q] * scale1 + shift1
                a1[p][q] = jnp.where(v > 0, v, LEAKINESS * v)        # (Cin, M) f32

        # ---- shifted + masked tap extraction (all in VMEM, no HBM im2col) ----
        def tap(a, dh, dw):
            sc = dh * wo + dw                    # flat column shift in output space
            if sc != 0:
                # want a'[:, c] = a[:, c + sc]  (roll semantics match jnp.roll)
                a = pltpu.roll(a, (-sc) % m, axis=1)
            conds = []
            if dh < 0:
                conds.append(ho_idx >= -dh)
            if dh > 0:
                conds.append(ho_idx < ho - dh)
            if dw < 0:
                conds.append(wo_idx >= -dw)
            if dw > 0:
                conds.append(wo_idx < wo - dw)
            if conds:
                msk = conds[0]
                for c in conds[1:]:
                    msk = jnp.logical_and(msk, c)
                a = jnp.where(msk, a, 0.0)
            return a.astype(jnp.bfloat16)        # bf16 MXU operand

        # ---- conv1: 3x3, stride s, pad 1 -> 9 accumulated MXU matmuls ----
        acc1 = jnp.zeros((cout, m), jnp.float32)
        for kh in range(3):
            ph, dh = phase_shift(kh)
            for kw in range(3):
                pw, dw = phase_shift(kw)
                a = tap(a1[ph][pw], dh, dw)                          # (Cin, M) bf16
                acc1 = acc1 + jnp.dot(w1_ref[kh, kw], a,
                                      preferred_element_type=jnp.float32)

        # ---- BN2 + LeakyReLU ------------------------------------------------
        mean2 = jnp.sum(acc1, axis=1, keepdims=True) / float(m)      # (Cout, 1)
        var2 = jnp.sum(acc1 * acc1, axis=1, keepdims=True) / float(m) - mean2 * mean2
        scale2 = jax.lax.rsqrt(var2 + EPS) * g2_ref[...]
        shift2 = b2_ref[...] - mean2 * scale2
        v = acc1 * scale2 + shift2
        a2 = jnp.where(v > 0, v, LEAKINESS * v)                      # (Cout, M) f32

        # ---- conv2 (3x3, stride 1, pad 1) + 1x1 shortcut + residual add ----
        acc2 = jnp.zeros((cout, m), jnp.float32)
        for kh in range(3):
            for kw in range(3):
                a = tap(a2, kh - 1, kw - 1)                          # (Cout, M) bf16
                acc2 = acc2 + jnp.dot(w2_ref[kh, kw], a,
                                      preferred_element_type=jnp.float32)
        # shortcut: 1x1 conv, stride s, on bn1-activated x -> phase (0, 0), no shift
        acc2 = acc2 + jnp.dot(ws_ref[...], a1[0][0].astype(jnp.bfloat16),
                              preferred_element_type=jnp.float32)

        o_ref[...] = acc2                                            # lane-dense (Cout, M)

    return kernel


# --------------------------------------------------------------------------
# Wrapper (layout plumbing only; all compute happens in the fused kernel)
# --------------------------------------------------------------------------
def _phase_decompose_nchw(x_nchw, stride):
    """out[p, q, c, n*Ho*Wo + i*Wo + j] = x[n, c, s*i + p, s*j + q]."""
    n, c, h, w = x_nchw.shape
    s = stride
    ho, wo = h // s, w // s
    parts = []
    for p in range(s):
        for q in range(s):
            xs = x_nchw[:, :, p::s, q::s]                            # (N, C, Ho, Wo)
            xs = jnp.transpose(xs, (1, 0, 2, 3)).reshape(c, n * ho * wo)
            parts.append(xs)
    return jnp.stack(parts, axis=0).reshape(s, s, c, n * ho * wo)


def res_layer_forward(x_nchw, params, stride):
    n, cin, h, w = x_nchw.shape
    cout = params["conv1_w"].shape[0]
    s = int(stride)
    assert h % s == 0 and w % s == 0, "spatial dims must be divisible by stride"
    ho, wo = h // s, w // s
    m = n * ho * wo

    xph = _phase_decompose_nchw(x_nchw.astype(jnp.float32), s)       # (s, s, Cin, M)

    col = jnp.arange(m, dtype=jnp.int32)
    wo_idx = (col % wo).reshape(1, m)
    ho_idx = ((col // wo) % ho).reshape(1, m)

    g1 = params["bn1_gamma"].reshape(cin, 1).astype(jnp.float32)
    b1 = params["bn1_beta"].reshape(cin, 1).astype(jnp.float32)
    g2 = params["bn2_gamma"].reshape(cout, 1).astype(jnp.float32)
    b2 = params["bn2_beta"].reshape(cout, 1).astype(jnp.float32)
    # OIHW -> (kh, kw, O, I); bf16 operands for the MXU, f32 accumulation in-kernel.
    w1 = jnp.transpose(params["conv1_w"], (2, 3, 0, 1)).astype(jnp.bfloat16)
    w2 = jnp.transpose(params["conv2_w"], (2, 3, 0, 1)).astype(jnp.bfloat16)
    ws = params["convs_w"][:, :, 0, 0].astype(jnp.bfloat16)          # (Cout, Cin)

    kernel = _build_fused_kernel(n, h, w, cin, cout, s)
    y2d = pl.pallas_call(
        kernel,
        out_shape=jax.ShapeDtypeStruct((cout, m), jnp.float32),
        in_specs=[_VMEM] * 10,
        out_specs=_VMEM,
        compiler_params=pltpu.CompilerParams(vmem_limit_bytes=32 * 1024 * 1024),
    )(xph, ho_idx, wo_idx, g1, b1, w1, g2, b2, w2, ws)

    # (Cout, N*Ho*Wo) -> NCHW
    return jnp.transpose(y2d.reshape(cout, n, ho, wo), (1, 0, 2, 3))


# --------------------------------------------------------------------------
# Pure-JAX f32 reference (for correctness check)
# --------------------------------------------------------------------------
def _ref_bn_leaky(x, g, b):
    mean = jnp.mean(x, axis=(0, 1, 2), keepdims=True)
    var = jnp.mean((x - mean) ** 2, axis=(0, 1, 2), keepdims=True)
    y = (x - mean) * jax.lax.rsqrt(var + EPS) * g + b
    return jnp.where(y > 0, y, LEAKINESS * y)


def _ref_conv(x_nhwc, w_oihw, stride, padding):
    w_hwio = jnp.transpose(w_oihw, (2, 3, 1, 0))
    return jax.lax.conv_general_dilated(
        x_nhwc, w_hwio, (stride, stride), [(padding, padding)] * 2,
        dimension_numbers=("NHWC", "HWIO", "NHWC"),
        precision=jax.lax.Precision.HIGHEST)


def reference_forward(x_nchw, params, stride):
    x = jnp.transpose(x_nchw, (0, 2, 3, 1)).astype(jnp.float32)
    x = _ref_bn_leaky(x, params["bn1_gamma"], params["bn1_beta"])
    out = _ref_conv(x, params["conv1_w"], stride, 1)
    out = _ref_bn_leaky(out, params["bn2_gamma"], params["bn2_beta"])
    out = _ref_conv(out, params["conv2_w"], 1, 1)
    res = _ref_conv(x, params["convs_w"], stride, 0)
    return jnp.transpose(res + out, (0, 3, 1, 2))


# --------------------------------------------------------------------------
if __name__ == "__main__":
    # Module config: in_filter=4, out_filter=8, stride=2, leakiness=0.01,
    # is_act_before_res=True  (in != out  =>  1x1 shortcut conv is used).
    in_f, out_f, stride = 4, 8, 2
    N, H, W = 2, 16, 16

    key = jax.random.PRNGKey(0)
    kx, k1, k2, k3 = jax.random.split(key, 4)

    x = jax.random.normal(kx, (N, in_f, H, W), dtype=jnp.float32)

    params = {
        # BatchNorm2d default init: gamma=1, beta=0 (training-mode batch stats)
        "bn1_gamma": jnp.ones((in_f,), jnp.float32),
        "bn1_beta": jnp.zeros((in_f,), jnp.float32),
        "bn2_gamma": jnp.ones((out_f,), jnp.float32),
        "bn2_beta": jnp.zeros((out_f,), jnp.float32),
        # Conv weights (PyTorch OIHW layout), deterministic synthetic init
        "conv1_w": 0.1 * jax.random.normal(k1, (out_f, in_f, 3, 3), jnp.float32),
        "conv2_w": 0.1 * jax.random.normal(k2, (out_f, out_f, 3, 3), jnp.float32),
        "convs_w": 0.1 * jax.random.normal(k3, (out_f, in_f, 1, 1), jnp.float32),
    }

    fwd = jax.jit(functools.partial(res_layer_forward, stride=stride))
    y = jax.block_until_ready(fwd(x, params))

    y_ref = jax.block_until_ready(
        jax.jit(functools.partial(reference_forward, stride=stride))(x, params))

    assert y.shape == (N, out_f, H // stride, W // stride), y.shape
    # bf16 MXU operands (f32 accumulate) vs f32-HIGHEST reference -> relaxed tolerance.
    assert jnp.allclose(y, y_ref, rtol=3e-2, atol=3e-2), \
        float(jnp.max(jnp.abs(y - y_ref)))

    print("KERNEL_OK")
</pallas_src>

<mosaic_0001>
module attributes {stable_mosaic.version = 11 : i64} {
  func.func @kernel(%arg0: memref<2x2x4x128xf32, #tpu.memory_space<vmem>>, %arg1: memref<1x128xi32, #tpu.memory_space<vmem>>, %arg2: memref<1x128xi32, #tpu.memory_space<vmem>>, %arg3: memref<4x1xf32, #tpu.memory_space<vmem>>, %arg4: memref<4x1xf32, #tpu.memory_space<vmem>>, %arg5: memref<3x3x8x4xbf16, #tpu.memory_space<vmem>>, %arg6: memref<8x1xf32, #tpu.memory_space<vmem>>, %arg7: memref<8x1xf32, #tpu.memory_space<vmem>>, %arg8: memref<3x3x8x8xbf16, #tpu.memory_space<vmem>>, %arg9: memref<8x4xbf16, #tpu.memory_space<vmem>>, %arg10: memref<8x128xf32, #tpu.memory_space<vmem>>) attributes {dimension_semantics = [], scalar_prefetch = 0 : i64, scratch_operands = 0 : i64, tpu.core_type = #tpu.core_type<tc>} {
    %c0 = arith.constant 0 : index
    %c0_0 = arith.constant 0 : index
    %0 = vector.load %arg1[%c0, %c0_0] : memref<1x128xi32, #tpu.memory_space<vmem>>, vector<1x128xi32>
    %c0_1 = arith.constant 0 : index
    %c0_2 = arith.constant 0 : index
    %1 = vector.load %arg2[%c0_1, %c0_2] : memref<1x128xi32, #tpu.memory_space<vmem>>, vector<1x128xi32>
    %c0_3 = arith.constant 0 : index
    %c0_4 = arith.constant 0 : index
    %c0_5 = arith.constant 0 : index
    %c0_6 = arith.constant 0 : index
    %2 = vector.load %arg0[%c0_3, %c0_4, %c0_5, %c0_6] : memref<2x2x4x128xf32, #tpu.memory_space<vmem>>, vector<1x1x4x128xf32>
    %3 = vector.shape_cast %2 : vector<1x1x4x128xf32> to vector<4x128xf32>
    %c0_7 = arith.constant 0 : index
    %c1 = arith.constant 1 : index
    %c0_8 = arith.constant 0 : index
    %c0_9 = arith.constant 0 : index
    %4 = vector.load %arg0[%c0_7, %c1, %c0_8, %c0_9] : memref<2x2x4x128xf32, #tpu.memory_space<vmem>>, vector<1x1x4x128xf32>
    %5 = vector.shape_cast %4 : vector<1x1x4x128xf32> to vector<4x128xf32>
    %c1_10 = arith.constant 1 : index
    %c0_11 = arith.constant 0 : index
    %c0_12 = arith.constant 0 : index
    %c0_13 = arith.constant 0 : index
    %6 = vector.load %arg0[%c1_10, %c0_11, %c0_12, %c0_13] : memref<2x2x4x128xf32, #tpu.memory_space<vmem>>, vector<1x1x4x128xf32>
    %7 = vector.shape_cast %6 : vector<1x1x4x128xf32> to vector<4x128xf32>
    %c1_14 = arith.constant 1 : index
    %c1_15 = arith.constant 1 : index
    %c0_16 = arith.constant 0 : index
    %c0_17 = arith.constant 0 : index
    %8 = vector.load %arg0[%c1_14, %c1_15, %c0_16, %c0_17] : memref<2x2x4x128xf32, #tpu.memory_space<vmem>>, vector<1x1x4x128xf32>
    %9 = vector.shape_cast %8 : vector<1x1x4x128xf32> to vector<4x128xf32>
    %10 = arith.mulf %3, %3 : vector<4x128xf32>
    %11 = arith.addf %3, %5 : vector<4x128xf32>
    %12 = arith.mulf %5, %5 : vector<4x128xf32>
    %13 = arith.addf %10, %12 : vector<4x128xf32>
    %14 = arith.addf %11, %7 : vector<4x128xf32>
    %15 = arith.mulf %7, %7 : vector<4x128xf32>
    %16 = arith.addf %13, %15 : vector<4x128xf32>
    %17 = arith.addf %14, %9 : vector<4x128xf32>
    %18 = arith.mulf %9, %9 : vector<4x128xf32>
    %19 = arith.addf %16, %18 : vector<4x128xf32>
    %cst = arith.constant dense<0.000000e+00> : vector<4xf32>
    %20 = vector.multi_reduction <add>, %17, %cst [1] : vector<4x128xf32> to vector<4xf32>
    %21 = vector.shape_cast %20 : vector<4xf32> to vector<4x1xf32>
    %cst_18 = arith.constant 5.120000e+02 : f32
    %22 = vector.broadcast %cst_18 : f32 to vector<4x1xf32>
    %23 = arith.divf %21, %22 : vector<4x1xf32>
    %cst_19 = arith.constant dense<0.000000e+00> : vector<4xf32>
    %24 = vector.multi_reduction <add>, %19, %cst_19 [1] : vector<4x128xf32> to vector<4xf32>
    %25 = vector.shape_cast %24 : vector<4xf32> to vector<4x1xf32>
    %cst_20 = arith.constant 5.120000e+02 : f32
    %26 = vector.broadcast %cst_20 : f32 to vector<4x1xf32>
    %27 = arith.divf %25, %26 : vector<4x1xf32>
    %28 = arith.mulf %23, %23 : vector<4x1xf32>
    %29 = arith.subf %27, %28 : vector<4x1xf32>
    %cst_21 = arith.constant 9.99999974E-6 : f32
    %30 = vector.broadcast %cst_21 : f32 to vector<4x1xf32>
    %31 = arith.addf %29, %30 : vector<4x1xf32>
    %32 = math.rsqrt %31 : vector<4x1xf32>
    %c0_22 = arith.constant 0 : index
    %c0_23 = arith.constant 0 : index
    %33 = vector.load %arg3[%c0_22, %c0_23] : memref<4x1xf32, #tpu.memory_space<vmem>>, vector<4x1xf32>
    %34 = arith.mulf %32, %33 : vector<4x1xf32>
    %c0_24 = arith.constant 0 : index
    %c0_25 = arith.constant 0 : index
    %35 = vector.load %arg4[%c0_24, %c0_25] : memref<4x1xf32, #tpu.memory_space<vmem>>, vector<4x1xf32>
    %36 = arith.mulf %23, %34 : vector<4x1xf32>
    %37 = arith.subf %35, %36 : vector<4x1xf32>
    %38 = vector.broadcast %34 : vector<4x1xf32> to vector<4x128xf32>
    %39 = arith.mulf %3, %38 : vector<4x128xf32>
    %40 = vector.broadcast %37 : vector<4x1xf32> to vector<4x128xf32>
    %41 = arith.addf %39, %40 : vector<4x128xf32>
    %cst_26 = arith.constant 0.000000e+00 : f32
    %42 = vector.broadcast %cst_26 : f32 to vector<4x128xf32>
    %43 = arith.cmpf ogt, %41, %42 : vector<4x128xf32>
    %cst_27 = arith.constant 0.00999999977 : f32
    %44 = vector.broadcast %cst_27 : f32 to vector<4x128xf32>
    %45 = arith.mulf %44, %41 : vector<4x128xf32>
    %46 = arith.select %43, %41, %45 : vector<4x128xi1>, vector<4x128xf32>
    %47 = vector.broadcast %34 : vector<4x1xf32> to vector<4x128xf32>
    %48 = arith.mulf %5, %47 : vector<4x128xf32>
    %49 = vector.broadcast %37 : vector<4x1xf32> to vector<4x128xf32>
    %50 = arith.addf %48, %49 : vector<4x128xf32>
    %cst_28 = arith.constant 0.000000e+00 : f32
    %51 = vector.broadcast %cst_28 : f32 to vector<4x128xf32>
    %52 = arith.cmpf ogt, %50, %51 : vector<4x128xf32>
    %cst_29 = arith.constant 0.00999999977 : f32
    %53 = vector.broadcast %cst_29 : f32 to vector<4x128xf32>
    %54 = arith.mulf %53, %50 : vector<4x128xf32>
    %55 = arith.select %52, %50, %54 : vector<4x128xi1>, vector<4x128xf32>
    %56 = vector.broadcast %34 : vector<4x1xf32> to vector<4x128xf32>
    %57 = arith.mulf %7, %56 : vector<4x128xf32>
    %58 = vector.broadcast %37 : vector<4x1xf32> to vector<4x128xf32>
    %59 = arith.addf %57, %58 : vector<4x128xf32>
    %cst_30 = arith.constant 0.000000e+00 : f32
    %60 = vector.broadcast %cst_30 : f32 to vector<4x128xf32>
    %61 = arith.cmpf ogt, %59, %60 : vector<4x128xf32>
    %cst_31 = arith.constant 0.00999999977 : f32
    %62 = vector.broadcast %cst_31 : f32 to vector<4x128xf32>
    %63 = arith.mulf %62, %59 : vector<4x128xf32>
    %64 = arith.select %61, %59, %63 : vector<4x128xi1>, vector<4x128xf32>
    %65 = vector.broadcast %34 : vector<4x1xf32> to vector<4x128xf32>
    %66 = arith.mulf %9, %65 : vector<4x128xf32>
    %67 = vector.broadcast %37 : vector<4x1xf32> to vector<4x128xf32>
    %68 = arith.addf %66, %67 : vector<4x128xf32>
    %cst_32 = arith.constant 0.000000e+00 : f32
    %69 = vector.broadcast %cst_32 : f32 to vector<4x128xf32>
    %70 = arith.cmpf ogt, %68, %69 : vector<4x128xf32>
    %cst_33 = arith.constant 0.00999999977 : f32
    %71 = vector.broadcast %cst_33 : f32 to vector<4x128xf32>
    %72 = arith.mulf %71, %68 : vector<4x128xf32>
    %73 = arith.select %70, %68, %72 : vector<4x128xi1>, vector<4x128xf32>
    %cst_34 = arith.constant 0.000000e+00 : f32
    %74 = vector.broadcast %cst_34 : f32 to vector<8x128xf32>
    %c9_i32 = arith.constant 9 : i32
    %75 = tpu.dynamic_rotate %73 by %c9_i32 dim 1 : vector<4x128xf32>, i32 -> vector<4x128xf32>
    %c1_i32 = arith.constant 1 : i32
    %76 = vector.broadcast %c1_i32 : i32 to vector<1x128xi32>
    %77 = arith.cmpi sge, %0, %76 : vector<1x128xi32>
    %c1_i32_35 = arith.constant 1 : i32
    %78 = vector.broadcast %c1_i32_35 : i32 to vector<1x128xi32>
    %79 = arith.cmpi sge, %1, %78 : vector<1x128xi32>
    %80 = arith.andi %77, %79 : vector<1x128xi1>
    %cst_36 = arith.constant 0.000000e+00 : f32
    %81 = vector.shape_cast %80 : vector<1x128xi1> to vector<1x128xi1>
    %82 = vector.broadcast %81 : vector<1x128xi1> to vector<4x128xi1>
    %83 = vector.broadcast %cst_36 : f32 to vector<4x128xf32>
    %84 = arith.select %82, %75, %83 : vector<4x128xi1>, vector<4x128xf32>
    %85 = arith.truncf %84 : vector<4x128xf32> to vector<4x128xbf16>
    %c0_37 = arith.constant 0 : index
    %c0_38 = arith.constant 0 : index
    %c0_39 = arith.constant 0 : index
    %c0_40 = arith.constant 0 : index
    %86 = vector.load %arg5[%c0_37, %c0_38, %c0_39, %c0_40] : memref<3x3x8x4xbf16, #tpu.memory_space<vmem>>, vector<1x1x8x4xbf16>
    %87 = vector.shape_cast %86 : vector<1x1x8x4xbf16> to vector<8x4xbf16>
    %cst_41 = arith.constant dense<0.000000e+00> : vector<8x128xf32>
    %88 = tpu.matmul %87, %85, %cst_41 {dimension_numbers = #tpu.dot_dimension_numbers<[1], [0], [0], [1], [0, 0, 1, 1], [], []>} : vector<8x4xbf16>, vector<4x128xbf16>, vector<8x128xf32> -> vector<8x128xf32>
    %89 = arith.addf %74, %88 : vector<8x128xf32>
    %c8_i32 = arith.constant 8 : i32
    %90 = tpu.dynamic_rotate %64 by %c8_i32 dim 1 : vector<4x128xf32>, i32 -> vector<4x128xf32>
    %c1_i32_42 = arith.constant 1 : i32
    %91 = vector.broadcast %c1_i32_42 : i32 to vector<1x128xi32>
    %92 = arith.cmpi sge, %0, %91 : vector<1x128xi32>
    %cst_43 = arith.constant 0.000000e+00 : f32
    %93 = vector.shape_cast %92 : vector<1x128xi1> to vector<1x128xi1>
    %94 = vector.broadcast %93 : vector<1x128xi1> to vector<4x128xi1>
    %95 = vector.broadcast %cst_43 : f32 to vector<4x128xf32>
    %96 = arith.select %94, %90, %95 : vector<4x128xi1>, vector<4x128xf32>
    %97 = arith.truncf %96 : vector<4x128xf32> to vector<4x128xbf16>
    %c0_44 = arith.constant 0 : index
    %c1_45 = arith.constant 1 : index
    %c0_46 = arith.constant 0 : index
    %c0_47 = arith.constant 0 : index
    %98 = vector.load %arg5[%c0_44, %c1_45, %c0_46, %c0_47] : memref<3x3x8x4xbf16, #tpu.memory_space<vmem>>, vector<1x1x8x4xbf16>
    %99 = vector.shape_cast %98 : vector<1x1x8x4xbf16> to vector<8x4xbf16>
    %cst_48 = arith.constant dense<0.000000e+00> : vector<8x128xf32>
    %100 = tpu.matmul %99, %97, %cst_48 {dimension_numbers = #tpu.dot_dimension_numbers<[1], [0], [0], [1], [0, 0, 1, 1], [], []>} : vector<8x4xbf16>, vector<4x128xbf16>, vector<8x128xf32> -> vector<8x128xf32>
    %101 = arith.addf %89, %100 : vector<8x128xf32>
    %c8_i32_49 = arith.constant 8 : i32
    %102 = tpu.dynamic_rotate %73 by %c8_i32_49 dim 1 : vector<4x128xf32>, i32 -> vector<4x128xf32>
    %c1_i32_50 = arith.constant 1 : i32
    %103 = vector.broadcast %c1_i32_50 : i32 to vector<1x128xi32>
    %104 = arith.cmpi sge, %0, %103 : vector<1x128xi32>
    %cst_51 = arith.constant 0.000000e+00 : f32
    %105 = vector.shape_cast %104 : vector<1x128xi1> to vector<1x128xi1>
    %106 = vector.broadcast %105 : vector<1x128xi1> to vector<4x128xi1>
    %107 = vector.broadcast %cst_51 : f32 to vector<4x128xf32>
    %108 = arith.select %106, %102, %107 : vector<4x128xi1>, vector<4x128xf32>
    %109 = arith.truncf %108 : vector<4x128xf32> to vector<4x128xbf16>
    %c0_52 = arith.constant 0 : index
    %c2 = arith.constant 2 : index
    %c0_53 = arith.constant 0 : index
    %c0_54 = arith.constant 0 : index
    %110 = vector.load %arg5[%c0_52, %c2, %c0_53, %c0_54] : memref<3x3x8x4xbf16, #tpu.memory_space<vmem>>, vector<1x1x8x4xbf16>
    %111 = vector.shape_cast %110 : vector<1x1x8x4xbf16> to vector<8x4xbf16>
    %cst_55 = arith.constant dense<0.000000e+00> : vector<8x128xf32>
    %112 = tpu.matmul %111, %109, %cst_55 {dimension_numbers = #tpu.dot_dimension_numbers<[1], [0], [0], [1], [0, 0, 1, 1], [], []>} : vector<8x4xbf16>, vector<4x128xbf16>, vector<8x128xf32> -> vector<8x128xf32>
    %113 = arith.addf %101, %112 : vector<8x128xf32>
    %c1_i32_56 = arith.constant 1 : i32
    %114 = tpu.dynamic_rotate %55 by %c1_i32_56 dim 1 : vector<4x128xf32>, i32 -> vector<4x128xf32>
    %c1_i32_57 = arith.constant 1 : i32
    %115 = vector.broadcast %c1_i32_57 : i32 to vector<1x128xi32>
    %116 = arith.cmpi sge, %1, %115 : vector<1x128xi32>
    %cst_58 = arith.constant 0.000000e+00 : f32
    %117 = vector.shape_cast %116 : vector<1x128xi1> to vector<1x128xi1>
    %118 = vector.broadcast %117 : vector<1x128xi1> to vector<4x128xi1>
    %119 = vector.broadcast %cst_58 : f32 to vector<4x128xf32>
    %120 = arith.select %118, %114, %119 : vector<4x128xi1>, vector<4x128xf32>
    %121 = arith.truncf %120 : vector<4x128xf32> to vector<4x128xbf16>
    %c1_59 = arith.constant 1 : index
    %c0_60 = arith.constant 0 : index
    %c0_61 = arith.constant 0 : index
    %c0_62 = arith.constant 0 : index
    %122 = vector.load %arg5[%c1_59, %c0_60, %c0_61, %c0_62] : memref<3x3x8x4xbf16, #tpu.memory_space<vmem>>, vector<1x1x8x4xbf16>
    %123 = vector.shape_cast %122 : vector<1x1x8x4xbf16> to vector<8x4xbf16>
    %cst_63 = arith.constant dense<0.000000e+00> : vector<8x128xf32>
    %124 = tpu.matmul %123, %121, %cst_63 {dimension_numbers = #tpu.dot_dimension_numbers<[1], [0], [0], [1], [0, 0, 1, 1], [], []>} : vector<8x4xbf16>, vector<4x128xbf16>, vector<8x128xf32> -> vector<8x128xf32>
    %125 = arith.addf %113, %124 : vector<8x128xf32>
    %126 = arith.truncf %46 : vector<4x128xf32> to vector<4x128xbf16>
    %c1_64 = arith.constant 1 : index
    %c1_65 = arith.constant 1 : index
    %c0_66 = arith.constant 0 : index
    %c0_67 = arith.constant 0 : index
    %127 = vector.load %arg5[%c1_64, %c1_65, %c0_66, %c0_67] : memref<3x3x8x4xbf16, #tpu.memory_space<vmem>>, vector<1x1x8x4xbf16>
    %128 = vector.shape_cast %127 : vector<1x1x8x4xbf16> to vector<8x4xbf16>
    %cst_68 = arith.constant dense<0.000000e+00> : vector<8x128xf32>
    %129 = tpu.matmul %128, %126, %cst_68 {dimension_numbers = #tpu.dot_dimension_numbers<[1], [0], [0], [1], [0, 0, 1, 1], [], []>} : vector<8x4xbf16>, vector<4x128xbf16>, vector<8x128xf32> -> vector<8x128xf32>
    %130 = arith.addf %125, %129 : vector<8x128xf32>
    %131 = arith.truncf %55 : vector<4x128xf32> to vector<4x128xbf16>
    %c1_69 = arith.constant 1 : index
    %c2_70 = arith.constant 2 : index
    %c0_71 = arith.constant 0 : index
    %c0_72 = arith.constant 0 : index
    %132 = vector.load %arg5[%c1_69, %c2_70, %c0_71, %c0_72] : memref<3x3x8x4xbf16, #tpu.memory_space<vmem>>, vector<1x1x8x4xbf16>
    %133 = vector.shape_cast %132 : vector<1x1x8x4xbf16> to vector<8x4xbf16>
    %cst_73 = arith.constant dense<0.000000e+00> : vector<8x128xf32>
    %134 = tpu.matmul %133, %131, %cst_73 {dimension_numbers = #tpu.dot_dimension_numbers<[1], [0], [0], [1], [0, 0, 1, 1], [], []>} : vector<8x4xbf16>, vector<4x128xbf16>, vector<8x128xf32> -> vector<8x128xf32>
    %135 = arith.addf %130, %134 : vector<8x128xf32>
    %c1_i32_74 = arith.constant 1 : i32
    %136 = tpu.dynamic_rotate %73 by %c1_i32_74 dim 1 : vector<4x128xf32>, i32 -> vector<4x128xf32>
    %c1_i32_75 = arith.constant 1 : i32
    %137 = vector.broadcast %c1_i32_75 : i32 to vector<1x128xi32>
    %138 = arith.cmpi sge, %1, %137 : vector<1x128xi32>
    %cst_76 = arith.constant 0.000000e+00 : f32
    %139 = vector.shape_cast %138 : vector<1x128xi1> to vector<1x128xi1>
    %140 = vector.broadcast %139 : vector<1x128xi1> to vector<4x128xi1>
    %141 = vector.broadcast %cst_76 : f32 to vector<4x128xf32>
    %142 = arith.select %140, %136, %141 : vector<4x128xi1>, vector<4x128xf32>
    %143 = arith.truncf %142 : vector<4x128xf32> to vector<4x128xbf16>
    %c2_77 = arith.constant 2 : index
    %c0_78 = arith.constant 0 : index
    %c0_79 = arith.constant 0 : index
    %c0_80 = arith.constant 0 : index
    %144 = vector.load %arg5[%c2_77, %c0_78, %c0_79, %c0_80] : memref<3x3x8x4xbf16, #tpu.memory_space<vmem>>, vector<1x1x8x4xbf16>
    %145 = vector.shape_cast %144 : vector<1x1x8x4xbf16> to vector<8x4xbf16>
    %cst_81 = arith.constant dense<0.000000e+00> : vector<8x128xf32>
    %146 = tpu.matmul %145, %143, %cst_81 {dimension_numbers = #tpu.dot_dimension_numbers<[1], [0], [0], [1], [0, 0, 1, 1], [], []>} : vector<8x4xbf16>, vector<4x128xbf16>, vector<8x128xf32> -> vector<8x128xf32>
    %147 = arith.addf %135, %146 : vector<8x128xf32>
    %148 = arith.truncf %64 : vector<4x128xf32> to vector<4x128xbf16>
    %c2_82 = arith.constant 2 : index
    %c1_83 = arith.constant 1 : index
    %c0_84 = arith.constant 0 : index
    %c0_85 = arith.constant 0 : index
    %149 = vector.load %arg5[%c2_82, %c1_83, %c0_84, %c0_85] : memref<3x3x8x4xbf16, #tpu.memory_space<vmem>>, vector<1x1x8x4xbf16>
    %150 = vector.shape_cast %149 : vector<1x1x8x4xbf16> to vector<8x4xbf16>
    %cst_86 = arith.constant dense<0.000000e+00> : vector<8x128xf32>
    %151 = tpu.matmul %150, %148, %cst_86 {dimension_numbers = #tpu.dot_dimension_numbers<[1], [0], [0], [1], [0, 0, 1, 1], [], []>} : vector<8x4xbf16>, vector<4x128xbf16>, vector<8x128xf32> -> vector<8x128xf32>
    %152 = arith.addf %147, %151 : vector<8x128xf32>
    %153 = arith.truncf %73 : vector<4x128xf32> to vector<4x128xbf16>
    %c2_87 = arith.constant 2 : index
    %c2_88 = arith.constant 2 : index
    %c0_89 = arith.constant 0 : index
    %c0_90 = arith.constant 0 : index
    %154 = vector.load %arg5[%c2_87, %c2_88, %c0_89, %c0_90] : memref<3x3x8x4xbf16, #tpu.memory_space<vmem>>, vector<1x1x8x4xbf16>
    %155 = vector.shape_cast %154 : vector<1x1x8x4xbf16> to vector<8x4xbf16>
    %cst_91 = arith.constant dense<0.000000e+00> : vector<8x128xf32>
    %156 = tpu.matmul %155, %153, %cst_91 {dimension_numbers = #tpu.dot_dimension_numbers<[1], [0], [0], [1], [0, 0, 1, 1], [], []>} : vector<8x4xbf16>, vector<4x128xbf16>, vector<8x128xf32> -> vector<8x128xf32>
    %157 = arith.addf %152, %156 : vector<8x128xf32>
    %cst_92 = arith.constant dense<0.000000e+00> : vector<8xf32>
    %158 = vector.multi_reduction <add>, %157, %cst_92 [1] : vector<8x128xf32> to vector<8xf32>
    %159 = vector.shape_cast %158 : vector<8xf32> to vector<8x1xf32>
    %cst_93 = arith.constant 1.280000e+02 : f32
    %160 = vector.broadcast %cst_93 : f32 to vector<8x1xf32>
    %161 = arith.divf %159, %160 : vector<8x1xf32>
    %162 = arith.mulf %157, %157 : vector<8x128xf32>
    %cst_94 = arith.constant dense<0.000000e+00> : vector<8xf32>
    %163 = vector.multi_reduction <add>, %162, %cst_94 [1] : vector<8x128xf32> to vector<8xf32>
    %164 = vector.shape_cast %163 : vector<8xf32> to vector<8x1xf32>
    %cst_95 = arith.constant 1.280000e+02 : f32
    %165 = vector.broadcast %cst_95 : f32 to vector<8x1xf32>
    %166 = arith.divf %164, %165 : vector<8x1xf32>
    %167 = arith.mulf %161, %161 : vector<8x1xf32>
    %168 = arith.subf %166, %167 : vector<8x1xf32>
    %cst_96 = arith.constant 9.99999974E-6 : f32
    %169 = vector.broadcast %cst_96 : f32 to vector<8x1xf32>
    %170 = arith.addf %168, %169 : vector<8x1xf32>
    %171 = math.rsqrt %170 : vector<8x1xf32>
    %c0_97 = arith.constant 0 : index
    %c0_98 = arith.constant 0 : index
    %172 = vector.load %arg6[%c0_97, %c0_98] : memref<8x1xf32, #tpu.memory_space<vmem>>, vector<8x1xf32>
    %173 = arith.mulf %171, %172 : vector<8x1xf32>
    %c0_99 = arith.constant 0 : index
    %c0_100 = arith.constant 0 : index
    %174 = vector.load %arg7[%c0_99, %c0_100] : memref<8x1xf32, #tpu.memory_space<vmem>>, vector<8x1xf32>
    %175 = arith.mulf %161, %173 : vector<8x1xf32>
    %176 = arith.subf %174, %175 : vector<8x1xf32>
    %177 = vector.broadcast %173 : vector<8x1xf32> to vector<8x128xf32>
    %178 = arith.mulf %157, %177 : vector<8x128xf32>
    %179 = vector.broadcast %176 : vector<8x1xf32> to vector<8x128xf32>
    %180 = arith.addf %178, %179 : vector<8x128xf32>
    %cst_101 = arith.constant 0.000000e+00 : f32
    %181 = vector.broadcast %cst_101 : f32 to vector<8x128xf32>
    %182 = arith.cmpf ogt, %180, %181 : vector<8x128xf32>
    %cst_102 = arith.constant 0.00999999977 : f32
    %183 = vector.broadcast %cst_102 : f32 to vector<8x128xf32>
    %184 = arith.mulf %183, %180 : vector<8x128xf32>
    %185 = arith.select %182, %180, %184 : vector<8x128xi1>, vector<8x128xf32>
    %cst_103 = arith.constant 0.000000e+00 : f32
    %186 = vector.broadcast %cst_103 : f32 to vector<8x128xf32>
    %c9_i32_104 = arith.constant 9 : i32
    %187 = tpu.dynamic_rotate %185 by %c9_i32_104 dim 1 : vector<8x128xf32>, i32 -> vector<8x128xf32>
    %c1_i32_105 = arith.constant 1 : i32
    %188 = vector.broadcast %c1_i32_105 : i32 to vector<1x128xi32>
    %189 = arith.cmpi sge, %0, %188 : vector<1x128xi32>
    %c1_i32_106 = arith.constant 1 : i32
    %190 = vector.broadcast %c1_i32_106 : i32 to vector<1x128xi32>
    %191 = arith.cmpi sge, %1, %190 : vector<1x128xi32>
    %192 = arith.andi %189, %191 : vector<1x128xi1>
    %cst_107 = arith.constant 0.000000e+00 : f32
    %193 = vector.shape_cast %192 : vector<1x128xi1> to vector<1x128xi1>
    %194 = vector.broadcast %193 : vector<1x128xi1> to vector<8x128xi1>
    %195 = vector.broadcast %cst_107 : f32 to vector<8x128xf32>
    %196 = arith.select %194, %187, %195 : vector<8x128xi1>, vector<8x128xf32>
    %197 = arith.truncf %196 : vector<8x128xf32> to vector<8x128xbf16>
    %c0_108 = arith.constant 0 : index
    %c0_109 = arith.constant 0 : index
    %c0_110 = arith.constant 0 : index
    %c0_111 = arith.constant 0 : index
    %198 = vector.load %arg8[%c0_108, %c0_109, %c0_110, %c0_111] : memref<3x3x8x8xbf16, #tpu.memory_space<vmem>>, vector<1x1x8x8xbf16>
    %199 = vector.shape_cast %198 : vector<1x1x8x8xbf16> to vector<8x8xbf16>
    %cst_112 = arith.constant dense<0.000000e+00> : vector<8x128xf32>
    %200 = tpu.matmul %199, %197, %cst_112 {dimension_numbers = #tpu.dot_dimension_numbers<[1], [0], [0], [1], [0, 0, 1, 1], [], []>} : vector<8x8xbf16>, vector<8x128xbf16>, vector<8x128xf32> -> vector<8x128xf32>
    %201 = arith.addf %186, %200 : vector<8x128xf32>
    %c8_i32_113 = arith.constant 8 : i32
    %202 = tpu.dynamic_rotate %185 by %c8_i32_113 dim 1 : vector<8x128xf32>, i32 -> vector<8x128xf32>
    %c1_i32_114 = arith.constant 1 : i32
    %203 = vector.broadcast %c1_i32_114 : i32 to vector<1x128xi32>
    %204 = arith.cmpi sge, %0, %203 : vector<1x128xi32>
    %cst_115 = arith.constant 0.000000e+00 : f32
    %205 = vector.shape_cast %204 : vector<1x128xi1> to vector<1x128xi1>
    %206 = vector.broadcast %205 : vector<1x128xi1> to vector<8x128xi1>
    %207 = vector.broadcast %cst_115 : f32 to vector<8x128xf32>
    %208 = arith.select %206, %202, %207 : vector<8x128xi1>, vector<8x128xf32>
    %209 = arith.truncf %208 : vector<8x128xf32> to vector<8x128xbf16>
    %c0_116 = arith.constant 0 : index
    %c1_117 = arith.constant 1 : index
    %c0_118 = arith.constant 0 : index
    %c0_119 = arith.constant 0 : index
    %210 = vector.load %arg8[%c0_116, %c1_117, %c0_118, %c0_119] : memref<3x3x8x8xbf16, #tpu.memory_space<vmem>>, vector<1x1x8x8xbf16>
    %211 = vector.shape_cast %210 : vector<1x1x8x8xbf16> to vector<8x8xbf16>
    %cst_120 = arith.constant dense<0.000000e+00> : vector<8x128xf32>
    %212 = tpu.matmul %211, %209, %cst_120 {dimension_numbers = #tpu.dot_dimension_numbers<[1], [0], [0], [1], [0, 0, 1, 1], [], []>} : vector<8x8xbf16>, vector<8x128xbf16>, vector<8x128xf32> -> vector<8x128xf32>
    %213 = arith.addf %201, %212 : vector<8x128xf32>
    %c7_i32 = arith.constant 7 : i32
    %214 = tpu.dynamic_rotate %185 by %c7_i32 dim 1 : vector<8x128xf32>, i32 -> vector<8x128xf32>
    %c1_i32_121 = arith.constant 1 : i32
    %215 = vector.broadcast %c1_i32_121 : i32 to vector<1x128xi32>
    %216 = arith.cmpi sge, %0, %215 : vector<1x128xi32>
    %c7_i32_122 = arith.constant 7 : i32
    %217 = vector.broadcast %c7_i32_122 : i32 to vector<1x128xi32>
    %218 = arith.cmpi slt, %1, %217 : vector<1x128xi32>
    %219 = arith.andi %216, %218 : vector<1x128xi1>
    %cst_123 = arith.constant 0.000000e+00 : f32
    %220 = vector.shape_cast %219 : vector<1x128xi1> to vector<1x128xi1>
    %221 = vector.broadcast %220 : vector<1x128xi1> to vector<8x128xi1>
    %222 = vector.broadcast %cst_123 : f32 to vector<8x128xf32>
    %223 = arith.select %221, %214, %222 : vector<8x128xi1>, vector<8x128xf32>
    %224 = arith.truncf %223 : vector<8x128xf32> to vector<8x128xbf16>
    %c0_124 = arith.constant 0 : index
    %c2_125 = arith.constant 2 : index
    %c0_126 = arith.constant 0 : index
    %c0_127 = arith.constant 0 : index
    %225 = vector.load %arg8[%c0_124, %c2_125, %c0_126, %c0_127] : memref<3x3x8x8xbf16, #tpu.memory_space<vmem>>, vector<1x1x8x8xbf16>
    %226 = vector.shape_cast %225 : vector<1x1x8x8xbf16> to vector<8x8xbf16>
    %cst_128 = arith.constant dense<0.000000e+00> : vector<8x128xf32>
    %227 = tpu.matmul %226, %224, %cst_128 {dimension_numbers = #tpu.dot_dimension_numbers<[1], [0], [0], [1], [0, 0, 1, 1], [], []>} : vector<8x8xbf16>, vector<8x128xbf16>, vector<8x128xf32> -> vector<8x128xf32>
    %228 = arith.addf %213, %227 : vector<8x128xf32>
    %c1_i32_129 = arith.constant 1 : i32
    %229 = tpu.dynamic_rotate %185 by %c1_i32_129 dim 1 : vector<8x128xf32>, i32 -> vector<8x128xf32>
    %c1_i32_130 = arith.constant 1 : i32
    %230 = vector.broadcast %c1_i32_130 : i32 to vector<1x128xi32>
    %231 = arith.cmpi sge, %1, %230 : vector<1x128xi32>
    %cst_131 = arith.constant 0.000000e+00 : f32
    %232 = vector.shape_cast %231 : vector<1x128xi1> to vector<1x128xi1>
    %233 = vector.broadcast %232 : vector<1x128xi1> to vector<8x128xi1>
    %234 = vector.broadcast %cst_131 : f32 to vector<8x128xf32>
    %235 = arith.select %233, %229, %234 : vector<8x128xi1>, vector<8x128xf32>
    %236 = arith.truncf %235 : vector<8x128xf32> to vector<8x128xbf16>
    %c1_132 = arith.constant 1 : index
    %c0_133 = arith.constant 0 : index
    %c0_134 = arith.constant 0 : index
    %c0_135 = arith.constant 0 : index
    %237 = vector.load %arg8[%c1_132, %c0_133, %c0_134, %c0_135] : memref<3x3x8x8xbf16, #tpu.memory_space<vmem>>, vector<1x1x8x8xbf16>
    %238 = vector.shape_cast %237 : vector<1x1x8x8xbf16> to vector<8x8xbf16>
    %cst_136 = arith.constant dense<0.000000e+00> : vector<8x128xf32>
    %239 = tpu.matmul %238, %236, %cst_136 {dimension_numbers = #tpu.dot_dimension_numbers<[1], [0], [0], [1], [0, 0, 1, 1], [], []>} : vector<8x8xbf16>, vector<8x128xbf16>, vector<8x128xf32> -> vector<8x128xf32>
    %240 = arith.addf %228, %239 : vector<8x128xf32>
    %241 = arith.truncf %185 : vector<8x128xf32> to vector<8x128xbf16>
    %c1_137 = arith.constant 1 : index
    %c1_138 = arith.constant 1 : index
    %c0_139 = arith.constant 0 : index
    %c0_140 = arith.constant 0 : index
    %242 = vector.load %arg8[%c1_137, %c1_138, %c0_139, %c0_140] : memref<3x3x8x8xbf16, #tpu.memory_space<vmem>>, vector<1x1x8x8xbf16>
    %243 = vector.shape_cast %242 : vector<1x1x8x8xbf16> to vector<8x8xbf16>
    %cst_141 = arith.constant dense<0.000000e+00> : vector<8x128xf32>
    %244 = tpu.matmul %243, %241, %cst_141 {dimension_numbers = #tpu.dot_dimension_numbers<[1], [0], [0], [1], [0, 0, 1, 1], [], []>} : vector<8x8xbf16>, vector<8x128xbf16>, vector<8x128xf32> -> vector<8x128xf32>
    %245 = arith.addf %240, %244 : vector<8x128xf32>
    %c127_i32 = arith.constant 127 : i32
    %246 = tpu.dynamic_rotate %185 by %c127_i32 dim 1 : vector<8x128xf32>, i32 -> vector<8x128xf32>
    %c7_i32_142 = arith.constant 7 : i32
    %247 = vector.broadcast %c7_i32_142 : i32 to vector<1x128xi32>
    %248 = arith.cmpi slt, %1, %247 : vector<1x128xi32>
    %cst_143 = arith.constant 0.000000e+00 : f32
    %249 = vector.shape_cast %248 : vector<1x128xi1> to vector<1x128xi1>
    %250 = vector.broadcast %249 : vector<1x128xi1> to vector<8x128xi1>
    %251 = vector.broadcast %cst_143 : f32 to vector<8x128xf32>
    %252 = arith.select %250, %246, %251 : vector<8x128xi1>, vector<8x128xf32>
    %253 = arith.truncf %252 : vector<8x128xf32> to vector<8x128xbf16>
    %c1_144 = arith.constant 1 : index
    %c2_145 = arith.constant 2 : index
    %c0_146 = arith.constant 0 : index
    %c0_147 = arith.constant 0 : index
    %254 = vector.load %arg8[%c1_144, %c2_145, %c0_146, %c0_147] : memref<3x3x8x8xbf16, #tpu.memory_space<vmem>>, vector<1x1x8x8xbf16>
    %255 = vector.shape_cast %254 : vector<1x1x8x8xbf16> to vector<8x8xbf16>
    %cst_148 = arith.constant dense<0.000000e+00> : vector<8x128xf32>
    %256 = tpu.matmul %255, %253, %cst_148 {dimension_numbers = #tpu.dot_dimension_numbers<[1], [0], [0], [1], [0, 0, 1, 1], [], []>} : vector<8x8xbf16>, vector<8x128xbf16>, vector<8x128xf32> -> vector<8x128xf32>
    %257 = arith.addf %245, %256 : vector<8x128xf32>
    %c121_i32 = arith.constant 121 : i32
    %258 = tpu.dynamic_rotate %185 by %c121_i32 dim 1 : vector<8x128xf32>, i32 -> vector<8x128xf32>
    %c7_i32_149 = arith.constant 7 : i32
    %259 = vector.broadcast %c7_i32_149 : i32 to vector<1x128xi32>
    %260 = arith.cmpi slt, %0, %259 : vector<1x128xi32>
    %c1_i32_150 = arith.constant 1 : i32
    %261 = vector.broadcast %c1_i32_150 : i32 to vector<1x128xi32>
    %262 = arith.cmpi sge, %1, %261 : vector<1x128xi32>
    %263 = arith.andi %260, %262 : vector<1x128xi1>
    %cst_151 = arith.constant 0.000000e+00 : f32
    %264 = vector.shape_cast %263 : vector<1x128xi1> to vector<1x128xi1>
    %265 = vector.broadcast %264 : vector<1x128xi1> to vector<8x128xi1>
    %266 = vector.broadcast %cst_151 : f32 to vector<8x128xf32>
    %267 = arith.select %265, %258, %266 : vector<8x128xi1>, vector<8x128xf32>
    %268 = arith.truncf %267 : vector<8x128xf32> to vector<8x128xbf16>
    %c2_152 = arith.constant 2 : index
    %c0_153 = arith.constant 0 : index
    %c0_154 = arith.constant 0 : index
    %c0_155 = arith.constant 0 : index
    %269 = vector.load %arg8[%c2_152, %c0_153, %c0_154, %c0_155] : memref<3x3x8x8xbf16, #tpu.memory_space<vmem>>, vector<1x1x8x8xbf16>
    %270 = vector.shape_cast %269 : vector<1x1x8x8xbf16> to vector<8x8xbf16>
    %cst_156 = arith.constant dense<0.000000e+00> : vector<8x128xf32>
    %271 = tpu.matmul %270, %268, %cst_156 {dimension_numbers = #tpu.dot_dimension_numbers<[1], [0], [0], [1], [0, 0, 1, 1], [], []>} : vector<8x8xbf16>, vector<8x128xbf16>, vector<8x128xf32> -> vector<8x128xf32>
    %272 = arith.addf %257, %271 : vector<8x128xf32>
    %c120_i32 = arith.constant 120 : i32
    %273 = tpu.dynamic_rotate %185 by %c120_i32 dim 1 : vector<8x128xf32>, i32 -> vector<8x128xf32>
    %c7_i32_157 = arith.constant 7 : i32
    %274 = vector.broadcast %c7_i32_157 : i32 to vector<1x128xi32>
    %275 = arith.cmpi slt, %0, %274 : vector<1x128xi32>
    %cst_158 = arith.constant 0.000000e+00 : f32
    %276 = vector.shape_cast %275 : vector<1x128xi1> to vector<1x128xi1>
    %277 = vector.broadcast %276 : vector<1x128xi1> to vector<8x128xi1>
    %278 = vector.broadcast %cst_158 : f32 to vector<8x128xf32>
    %279 = arith.select %277, %273, %278 : vector<8x128xi1>, vector<8x128xf32>
    %280 = arith.truncf %279 : vector<8x128xf32> to vector<8x128xbf16>
    %c2_159 = arith.constant 2 : index
    %c1_160 = arith.constant 1 : index
    %c0_161 = arith.constant 0 : index
    %c0_162 = arith.constant 0 : index
    %281 = vector.load %arg8[%c2_159, %c1_160, %c0_161, %c0_162] : memref<3x3x8x8xbf16, #tpu.memory_space<vmem>>, vector<1x1x8x8xbf16>
    %282 = vector.shape_cast %281 : vector<1x1x8x8xbf16> to vector<8x8xbf16>
    %cst_163 = arith.constant dense<0.000000e+00> : vector<8x128xf32>
    %283 = tpu.matmul %282, %280, %cst_163 {dimension_numbers = #tpu.dot_dimension_numbers<[1], [0], [0], [1], [0, 0, 1, 1], [], []>} : vector<8x8xbf16>, vector<8x128xbf16>, vector<8x128xf32> -> vector<8x128xf32>
    %284 = arith.addf %272, %283 : vector<8x128xf32>
    %c119_i32 = arith.constant 119 : i32
    %285 = tpu.dynamic_rotate %185 by %c119_i32 dim 1 : vector<8x128xf32>, i32 -> vector<8x128xf32>
    %c7_i32_164 = arith.constant 7 : i32
    %286 = vector.broadcast %c7_i32_164 : i32 to vector<1x128xi32>
    %287 = arith.cmpi slt, %0, %286 : vector<1x128xi32>
    %c7_i32_165 = arith.constant 7 : i32
    %288 = vector.broadcast %c7_i32_165 : i32 to vector<1x128xi32>
    %289 = arith.cmpi slt, %1, %288 : vector<1x128xi32>
    %290 = arith.andi %287, %289 : vector<1x128xi1>
    %cst_166 = arith.constant 0.000000e+00 : f32
    %291 = vector.shape_cast %290 : vector<1x128xi1> to vector<1x128xi1>
    %292 = vector.broadcast %291 : vector<1x128xi1> to vector<8x128xi1>
    %293 = vector.broadcast %cst_166 : f32 to vector<8x128xf32>
    %294 = arith.select %292, %285, %293 : vector<8x128xi1>, vector<8x128xf32>
    %295 = arith.truncf %294 : vector<8x128xf32> to vector<8x128xbf16>
    %c2_167 = arith.constant 2 : index
    %c2_168 = arith.constant 2 : index
    %c0_169 = arith.constant 0 : index
    %c0_170 = arith.constant 0 : index
    %296 = vector.load %arg8[%c2_167, %c2_168, %c0_169, %c0_170] : memref<3x3x8x8xbf16, #tpu.memory_space<vmem>>, vector<1x1x8x8xbf16>
    %297 = vector.shape_cast %296 : vector<1x1x8x8xbf16> to vector<8x8xbf16>
    %cst_171 = arith.constant dense<0.000000e+00> : vector<8x128xf32>
    %298 = tpu.matmul %297, %295, %cst_171 {dimension_numbers = #tpu.dot_dimension_numbers<[1], [0], [0], [1], [0, 0, 1, 1], [], []>} : vector<8x8xbf16>, vector<8x128xbf16>, vector<8x128xf32> -> vector<8x128xf32>
    %299 = arith.addf %284, %298 : vector<8x128xf32>
    %c0_172 = arith.constant 0 : index
    %c0_173 = arith.constant 0 : index
    %300 = vector.load %arg9[%c0_172, %c0_173] : memref<8x4xbf16, #tpu.memory_space<vmem>>, vector<8x4xbf16>
    %301 = arith.truncf %46 : vector<4x128xf32> to vector<4x128xbf16>
    %cst_174 = arith.constant dense<0.000000e+00> : vector<8x128xf32>
    %302 = tpu.matmul %300, %301, %cst_174 {dimension_numbers = #tpu.dot_dimension_numbers<[1], [0], [0], [1], [0, 0, 1, 1], [], []>} : vector<8x4xbf16>, vector<4x128xbf16>, vector<8x128xf32> -> vector<8x128xf32>
    %303 = arith.addf %299, %302 : vector<8x128xf32>
    %c0_175 = arith.constant 0 : index
    %c0_176 = arith.constant 0 : index
    %304 = vector.load %arg10[%c0_175, %c0_176] : memref<8x128xf32, #tpu.memory_space<vmem>>, vector<8x128xf32>
    tpu.vector_store %arg10[%c0_175, %c0_176], %303 {strides = array<i32>} : memref<8x128xf32, #tpu.memory_space<vmem>>, vector<8x128xf32>,
    return
  }
}

</mosaic_0001>

<llo_original>
// kernel: res_layer_forward.1
$region0: #{res_layer_forward.1}
  #allocation0 [shape = 'u32[]', space=smem, size = 0x4, offset = 0x4, fixed_abs, tag = 'smem constant byte address 0x4 - core index']
  #allocation1 [shape = 'u32[144,128]{1,0:T(1,128)}', space=vmem, size = 0x12000, scoped, tag = 'internal scratch']
  %s0 = inlined_call_operand.vmem [shape: f32[2,2,4,128], index: 0, kind: input, shape index: {}]
  %s1 = inlined_call_operand.vmem [shape: s32[1,128], index: 1, kind: input, shape index: {}]
  %s2 = inlined_call_operand.vmem [shape: s32[1,128], index: 2, kind: input, shape index: {}]
  %s3 = inlined_call_operand.vmem [shape: f32[4,1], index: 3, kind: input, shape index: {}]
  %s4 = inlined_call_operand.vmem [shape: f32[4,1], index: 4, kind: input, shape index: {}]
  %s5 = inlined_call_operand.vmem [shape: bf16[3,3,8,4], index: 5, kind: input, shape index: {}]
  %s6 = inlined_call_operand.vmem [shape: f32[8,1], index: 6, kind: input, shape index: {}]
  %s7 = inlined_call_operand.vmem [shape: f32[8,1], index: 7, kind: input, shape index: {}]
  %s8 = inlined_call_operand.vmem [shape: bf16[3,3,8,8], index: 8, kind: input, shape index: {}]
  %s9 = inlined_call_operand.vmem [shape: bf16[8,4], index: 9, kind: input, shape index: {}]
  %s10 = inlined_call_operand.vmem [shape: f32[8,128], index: 10, kind: output, shape index: {}]
  %s11 = sld [smem:[#allocation0]]
  $region50: #{res_layer_forward.1} parent=0
    _
  %s13 = ssub.s32 1, %s11
  %s14 = scalar_select 0, %s13, %s11
  // Predicated region
  $region2: #{res_layer_forward.1} parent=0 // pred_check
    _
  $region3: #{res_layer_forward.1} parent=0 // pred_check_branch
    %16 = sbr.rel (0) target = $region5
  $region4: #{res_layer_forward.1} parent=0 // pred_region
    _
  $region5: #{res_layer_forward.1} parent=0 // pred_fallthru
    _
  // Predicated region
  $region6: #{res_layer_forward.1} parent=0 // pred_check
    _
  $region7: #{res_layer_forward.1} parent=0 // pred_check_branch
    %18 = sbr.rel (0) target = $region9
  $region8: #{res_layer_forward.1} parent=0 // pred_region
    _
  $region9: #{res_layer_forward.1} parent=0 // pred_fallthru
    _
  // Predicated region
  $region10: #{res_layer_forward.1} parent=0 // pred_check
    _
  $region11: #{res_layer_forward.1} parent=0 // pred_check_branch
    %20 = sbr.rel (0) target = $region13
  $region12: #{res_layer_forward.1} parent=0 // pred_region
    _
  $region13: #{res_layer_forward.1} parent=0 // pred_fallthru
    _
  // Predicated region
  $region14: #{res_layer_forward.1} parent=0 // pred_check
    _
  $region15: #{res_layer_forward.1} parent=0 // pred_check_branch
    %22 = sbr.rel (0) target = $region17
  $region16: #{res_layer_forward.1} parent=0 // pred_region
    _
  $region17: #{res_layer_forward.1} parent=0 // pred_fallthru
    _
  // Predicated region
  $region18: #{res_layer_forward.1} parent=0 // pred_check
    _
  $region19: #{res_layer_forward.1} parent=0 // pred_check_branch
    %24 = sbr.rel (0) target = $region21
  $region20: #{res_layer_forward.1} parent=0 // pred_region
    _
  $region21: #{res_layer_forward.1} parent=0 // pred_fallthru
    _
  // Predicated region
  $region22: #{res_layer_forward.1} parent=0 // pred_check
    _
  $region23: #{res_layer_forward.1} parent=0 // pred_check_branch
    %26 = sbr.rel (0) target = $region25
  $region24: #{res_layer_forward.1} parent=0 // pred_region
    _
  $region25: #{res_layer_forward.1} parent=0 // pred_fallthru
    _
  // Predicated region
  $region26: #{res_layer_forward.1} parent=0 // pred_check
    _
  $region27: #{res_layer_forward.1} parent=0 // pred_check_branch
    %28 = sbr.rel (0) target = $region29
  $region28: #{res_layer_forward.1} parent=0 // pred_region
    _
  $region29: #{res_layer_forward.1} parent=0 // pred_fallthru
    _
  // Predicated region
  $region30: #{res_layer_forward.1} parent=0 // pred_check
    _
  $region31: #{res_layer_forward.1} parent=0 // pred_check_branch
    %30 = sbr.rel (0) target = $region33
  $region32: #{res_layer_forward.1} parent=0 // pred_region
    _
  $region33: #{res_layer_forward.1} parent=0 // pred_fallthru
    _
  // Predicated region
  $region34: #{res_layer_forward.1} parent=0 // pred_check
    _
  $region35: #{res_layer_forward.1} parent=0 // pred_check_branch
    %32 = sbr.rel (0) target = $region37
  $region36: #{res_layer_forward.1} parent=0 // pred_region
    _
  $region37: #{res_layer_forward.1} parent=0 // pred_fallthru
    _
  // Predicated region
  $region38: #{res_layer_forward.1} parent=0 // pred_check
    _
  $region39: #{res_layer_forward.1} parent=0 // pred_check_branch
    %34 = sbr.rel (0) target = $region41
  $region40: #{res_layer_forward.1} parent=0 // pred_region
    _
  $region41: #{res_layer_forward.1} parent=0 // pred_fallthru
    _
  %v36 = vld [vmem:[%s1] sm:$0x1]
  %v37 = vld [vmem:[%s2] sm:$0x1]
  %v38 = vld [vmem:[%s0] sm:$0xf]
  %s39 = scalar_lea.vmem %s0, 4
  %v40 = vld [vmem:[%s39] sm:$0xf]
  %s41 = scalar_lea.vmem %s0, 8
  %v42 = vld [vmem:[%s41] sm:$0xf]
  %s43 = scalar_lea.vmem %s0, 12
  %v44 = vld [vmem:[%s43] sm:$0xf]
  %v45 = vmul.f32 %v38, %v38
  %v46 = vadd.f32 %v38, %v40
  %v47 = vmul.f32 %v40, %v40
  %v48 = vadd.f32 %v45, %v47
  %v49 = vadd.f32 %v46, %v42
  %v50 = vmul.f32 %v42, %v42
  %v51 = vadd.f32 %v48, %v50
  %v52 = vadd.f32 %v49, %v44
  %v53 = vmul.f32 %v44, %v44
  %v54 = vadd.f32 %v51, %v53
  %vm55 = vcmask 1043456
  %v56 = vsel %vm55, %v52, 0.0
  %57 = vadd.xlane.f32.xlu0 %v56
  %v58 = vpop.xlane.xlu0 %57
  %v59 = vrcp.pop 512.0
  %v60 = vmul.f32 %v58, %v59
  %v61 = vsel %vm55, %v54, 0.0
  %62 = vadd.xlane.f32.xlu0 %v61
  %v63 = vpop.xlane.xlu0 %62
  %v64 = vmul.f32 %v63, %v59
  %v65 = vmul.f32 %v60, %v60
  %v66 = vsub.f32 %v64, %v65
  %v67 = vadd.f32 %v66, 1e-05
  %v68 = vrsqrt.pop %v67
  %v69 = vld [vmem:[%s3] sm:$0xf]
  %v70 = vmul.f32 %v68, %v69
  %v71 = vld [vmem:[%s4] sm:$0xf]
  %v72 = vmul.f32 %v60, %v70
  %v73 = vsub.f32 %v71, %v72
  %75 = vset.pattern.permute.xlu0 0
  %76 = vperm.xlu0 %75, %v70
  %v77 = vpop.permute.xlu0 %76
  %v79 = vmul.f32 %v38, %v77
  %81 = vset.pattern.permute.xlu0 0
  %82 = vperm.xlu0 %81, %v73
  %v83 = vpop.permute.xlu0 %82
  %v85 = vadd.f32 %v79, %v83
  %vm86 = vcmp.gt.f32.partialorder %v85, 0.0
  %v87 = vmul.f32 %v85, 0.01
  %v88 = vsel %vm86, %v85, %v87
  %v89 = vmul.f32 %v40, %v77
  %v90 = vadd.f32 %v89, %v83
  %vm91 = vcmp.gt.f32.partialorder %v90, 0.0
  %v92 = vmul.f32 %v90, 0.01
  %v93 = vsel %vm91, %v90, %v92
  %v94 = vmul.f32 %v42, %v77
  %v95 = vadd.f32 %v94, %v83
  %vm96 = vcmp.gt.f32.partialorder %v95, 0.0
  %v97 = vmul.f32 %v95, 0.01
  %v98 = vsel %vm96, %v95, %v97
  %v99 = vmul.f32 %v44, %v77
  %v100 = vadd.f32 %v99, %v83
  %vm101 = vcmp.gt.f32.partialorder %v100, 0.0
  %v102 = vmul.f32 %v100, 0.01
  %v103 = vsel %vm101, %v100, %v102
  %104 = vrot.lane.b32.xlu0 %v103, 9
  %v105 = vpop.permute.xlu0 %104
  %vm106 = vcmp.ge.s32.totalorder %v36, 1
  %vm107 = vcmp.ge.s32.totalorder %v37, 1
  %vm108 = vmand %vm106, %vm107
  %v109 = vsel %vm108, 1, 0
  %v110 = vlaneseq
  %v111 = vshrl.u32 %v110, 7
  %v112 = vsub.s32 0, %v111
  %v113 = vrot.slane %v109, %v112
  %vm114 = vcmp.eq.s32.totalorder %v113, 1
  %v115 = vsel %vm114, %v105, 0.0
  %v116 = vpack.c.bf16 %v115, %v115
  %v117 = vld [vmem:[%s5] sm:$0xf]
  %118 = vrot.lane.b32.xlu0 %v98, 8
  %v119 = vpop.permute.xlu0 %118
  %v120 = vsel %vm106, 1, 0
  %v121 = vlaneseq
  %v122 = vshrl.u32 %v121, 7
  %v123 = vsub.s32 0, %v122
  %v124 = vrot.slane %v120, %v123
  %vm125 = vcmp.eq.s32.totalorder %v124, 1
  %v126 = vsel %vm125, %v119, 0.0
  %v127 = vpack.c.bf16 %v126, %v126
  %s128 = scalar_lea.vmem %s5, 4
  %v129 = vld [vmem:[%s128] sm:$0xf]
  %vm130 = vcmask 31744
  %v132 = vsel %vm130, %v129, 0
  %vm134 = vcmask 1041408
  %v136 = vsel %vm134, %v127, 0
  %138 = vmatprep.subr.bf16.mxu0 0
  %139 = vmatpush1.bf16.msra.mxu0 %v136
  %140 = vmatprep.subr.bf16.mxu0 0
  %141 = vmatpush1.bf16.msra.mxu0 0
  %142 = vmatprep.subr.bf16.mxu0 0
  %143 = vmatpush1.bf16.msra.mxu0 0
  %144 = vmatprep.subr.bf16.mxu0 0
  %145 = vmatpush1.bf16.msra.mxu0 0
  %146 = vmatprep.subr.bf16.mxu0 0
  %147 = vmatpush1.bf16.msra.mxu0 0
  %148 = vmatprep.subr.bf16.mxu0 0
  %149 = vmatpush1.bf16.msra.mxu0 0
  %150 = vmatprep.subr.bf16.mxu0 0
  %151 = vmatpush1.bf16.msra.mxu0 0
  %152 = vmatprep.subr.bf16.mxu0 0
  %153 = vmatpush1.bf16.msra.mxu0 0
  %154 = vmatprep.subr.bf16.mxu0 0
  %155 = vmatpush1.bf16.msra.mxu0 0
  %156 = vmatprep.subr.bf16.mxu0 0
  %157 = vmatpush1.bf16.msra.mxu0 0
  %158 = vmatprep.subr.bf16.mxu0 0
  %159 = vmatpush1.bf16.msra.mxu0 0
  %160 = vmatprep.subr.bf16.mxu0 0
  %161 = vmatpush1.bf16.msra.mxu0 0
  %162 = vmatprep.subr.bf16.mxu0 0
  %163 = vmatpush1.bf16.msra.mxu0 0
  %164 = vmatprep.subr.bf16.mxu0 0
  %165 = vmatpush1.bf16.msra.mxu0 0
  %166 = vmatprep.subr.bf16.mxu0 0
  %167 = vmatpush1.bf16.msra.mxu0 0
  %168 = vmatprep.subr.bf16.mxu0 0
  %169 = vmatpush1.bf16.msra.mxu0 0
  %170 = vmatprep.mubr.bf16.mxu0 0
  %171 = vmatmul.mubr.bf16.gmra.mrb[0].mxu0 %v132
  %v172 = vpop.f32.mrb[0].mxu0
  %v173 = vadd.f32 0.0, %v172
  %v174 = vpop.f32.mrb[0].mxu0
  %v175 = vpop.f32.mrb[0].mxu0
  %v176 = vpop.f32.mrb[0].mxu0
  %177 = vdwg.mxu0
  %v179 = vsel %vm130, %v117, 0
  %v182 = vsel %vm134, %v116, 0
  %184 = vmatprep.subr.bf16.mxu0 0
  %185 = vmatpush1.bf16.msra.mxu0 %v182
  %186 = vmatprep.subr.bf16.mxu0 0
  %187 = vmatpush1.bf16.msra.mxu0 0
  %188 = vmatprep.subr.bf16.mxu0 0
  %189 = vmatpush1.bf16.msra.mxu0 0
  %190 = vmatprep.subr.bf16.mxu0 0
  %191 = vmatpush1.bf16.msra.mxu0 0
  %192 = vmatprep.subr.bf16.mxu0 0
  %193 = vmatpush1.bf16.msra.mxu0 0
  %194 = vmatprep.subr.bf16.mxu0 0
  %195 = vmatpush1.bf16.msra.mxu0 0
  %196 = vmatprep.subr.bf16.mxu0 0
  %197 = vmatpush1.bf16.msra.mxu0 0
  %198 = vmatprep.subr.bf16.mxu0 0
  %199 = vmatpush1.bf16.msra.mxu0 0
  %200 = vmatprep.subr.bf16.mxu0 0
  %201 = vmatpush1.bf16.msra.mxu0 0
  %202 = vmatprep.subr.bf16.mxu0 0
  %203 = vmatpush1.bf16.msra.mxu0 0
  %204 = vmatprep.subr.bf16.mxu0 0
  %205 = vmatpush1.bf16.msra.mxu0 0
  %206 = vmatprep.subr.bf16.mxu0 0
  %207 = vmatpush1.bf16.msra.mxu0 0
  %208 = vmatprep.subr.bf16.mxu0 0
  %209 = vmatpush1.bf16.msra.mxu0 0
  %210 = vmatprep.subr.bf16.mxu0 0
  %211 = vmatpush1.bf16.msra.mxu0 0
  %212 = vmatprep.subr.bf16.mxu0 0
  %213 = vmatpush1.bf16.msra.mxu0 0
  %214 = vmatprep.subr.bf16.mxu0 0
  %215 = vmatpush1.bf16.msra.mxu0 0
  %216 = vmatprep.mubr.bf16.mxu0 0
  %217 = vmatmul.mubr.bf16.gmra.mrb[0].mxu0 %v179
  %v218 = vpop.f32.mrb[0].mxu0
  %v219 = vadd.f32 %v173, %v218
  %v220 = vpop.f32.mrb[0].mxu0
  %v221 = vpop.f32.mrb[0].mxu0
  %v222 = vpop.f32.mrb[0].mxu0
  %223 = vdwg.mxu0
  %224 = vrot.lane.b32.xlu0 %v103, 8
  %v225 = vpop.permute.xlu0 %224
  %v226 = vsel %vm125, %v225, 0.0
  %v227 = vpack.c.bf16 %v226, %v226
  %s228 = scalar_lea.vmem %s5, 8
  %v229 = vld [vmem:[%s228] sm:$0xf]
  %v231 = vsel %vm130, %v229, 0
  %v234 = vsel %vm134, %v227, 0
  %236 = vmatprep.subr.bf16.mxu0 0
  %237 = vmatpush1.bf16.msra.mxu0 %v234
  %238 = vmatprep.subr.bf16.mxu0 0
  %239 = vmatpush1.bf16.msra.mxu0 0
  %240 = vmatprep.subr.bf16.mxu0 0
  %241 = vmatpush1.bf16.msra.mxu0 0
  %242 = vmatprep.subr.bf16.mxu0 0
  %243 = vmatpush1.bf16.msra.mxu0 0
  %244 = vmatprep.subr.bf16.mxu0 0
  %245 = vmatpush1.bf16.msra.mxu0 0
  %246 = vmatprep.subr.bf16.mxu0 0
  %247 = vmatpush1.bf16.msra.mxu0 0
  %248 = vmatprep.subr.bf16.mxu0 0
  %249 = vmatpush1.bf16.msra.mxu0 0
  %250 = vmatprep.subr.bf16.mxu0 0
  %251 = vmatpush1.bf16.msra.mxu0 0
  %252 = vmatprep.subr.bf16.mxu0 0
  %253 = vmatpush1.bf16.msra.mxu0 0
  %254 = vmatprep.subr.bf16.mxu0 0
  %255 = vmatpush1.bf16.msra.mxu0 0
  %256 = vmatprep.subr.bf16.mxu0 0
  %257 = vmatpush1.bf16.msra.mxu0 0
  %258 = vmatprep.subr.bf16.mxu0 0
  %259 = vmatpush1.bf16.msra.mxu0 0
  %260 = vmatprep.subr.bf16.mxu0 0
  %261 = vmatpush1.bf16.msra.mxu0 0
  %262 = vmatprep.subr.bf16.mxu0 0
  %263 = vmatpush1.bf16.msra.mxu0 0
  %264 = vmatprep.subr.bf16.mxu0 0
  %265 = vmatpush1.bf16.msra.mxu0 0
  %266 = vmatprep.subr.bf16.mxu0 0
  %267 = vmatpush1.bf16.msra.mxu0 0
  %268 = vmatprep.mubr.bf16.mxu0 0
  %269 = vmatmul.mubr.bf16.gmra.mrb[0].mxu0 %v231
  %v270 = vpop.f32.mrb[0].mxu0
  %v271 = vadd.f32 0.0, %v270
  %v272 = vpop.f32.mrb[0].mxu0
  %v273 = vpop.f32.mrb[0].mxu0
  %v274 = vpop.f32.mrb[0].mxu0
  %275 = vdwg.mxu0
  %v276 = vadd.f32 %v219, %v271
  %277 = vrot.lane.b32.xlu0 %v93, 1
  %v278 = vpop.permute.xlu0 %277
  %v279 = vsel %vm107, 1, 0
  %v280 = vlaneseq
  %v281 = vshrl.u32 %v280, 7
  %v282 = vsub.s32 0, %v281
  %v283 = vrot.slane %v279, %v282
  %vm284 = vcmp.eq.s32.totalorder %v283, 1
  %v285 = vsel %vm284, %v278, 0.0
  %v286 = vpack.c.bf16 %v285, %v285
  %s287 = scalar_lea.vmem %s5, 12
  %v288 = vld [vmem:[%s287] sm:$0xf]
  %v290 = vsel %vm130, %v288, 0
  %v293 = vsel %vm134, %v286, 0
  %295 = vmatprep.subr.bf16.mxu0 0
  %296 = vmatpush1.bf16.msra.mxu0 %v293
  %297 = vmatprep.subr.bf16.mxu0 0
  %298 = vmatpush1.bf16.msra.mxu0 0
  %299 = vmatprep.subr.bf16.mxu0 0
  %300 = vmatpush1.bf16.msra.mxu0 0
  %301 = vmatprep.subr.bf16.mxu0 0
  %302 = vmatpush1.bf16.msra.mxu0 0
  %303 = vmatprep.subr.bf16.mxu0 0
  %304 = vmatpush1.bf16.msra.mxu0 0
  %305 = vmatprep.subr.bf16.mxu0 0
  %306 = vmatpush1.bf16.msra.mxu0 0
  %307 = vmatprep.subr.bf16.mxu0 0
  %308 = vmatpush1.bf16.msra.mxu0 0
  %309 = vmatprep.subr.bf16.mxu0 0
  %310 = vmatpush1.bf16.msra.mxu0 0
  %311 = vmatprep.subr.bf16.mxu0 0
  %312 = vmatpush1.bf16.msra.mxu0 0
  %313 = vmatprep.subr.bf16.mxu0 0
  %314 = vmatpush1.bf16.msra.mxu0 0
  %315 = vmatprep.subr.bf16.mxu0 0
  %316 = vmatpush1.bf16.msra.mxu0 0
  %317 = vmatprep.subr.bf16.mxu0 0
  %318 = vmatpush1.bf16.msra.mxu0 0
  %319 = vmatprep.subr.bf16.mxu0 0
  %320 = vmatpush1.bf16.msra.mxu0 0
  %321 = vmatprep.subr.bf16.mxu0 0
  %322 = vmatpush1.bf16.msra.mxu0 0
  %323 = vmatprep.subr.bf16.mxu0 0
  %324 = vmatpush1.bf16.msra.mxu0 0
  %325 = vmatprep.subr.bf16.mxu0 0
  %326 = vmatpush1.bf16.msra.mxu0 0
  %327 = vmatprep.mubr.bf16.mxu0 0
  %328 = vmatmul.mubr.bf16.gmra.mrb[0].mxu0 %v290
  %v329 = vpop.f32.mrb[0].mxu0
  %v330 = vadd.f32 0.0, %v329
  %v331 = vpop.f32.mrb[0].mxu0
  %v332 = vpop.f32.mrb[0].mxu0
  %v333 = vpop.f32.mrb[0].mxu0
  %334 = vdwg.mxu0
  %v335 = vadd.f32 %v276, %v330
  %v336 = vpack.c.bf16 %v88, %v88
  %s337 = scalar_lea.vmem %s5, 16
  %v338 = vld [vmem:[%s337] sm:$0xf]
  %v340 = vsel %vm130, %v338, 0
  %v343 = vsel %vm134, %v336, 0
  %345 = vmatprep.subr.bf16.mxu0 0
  %346 = vmatpush1.bf16.msra.mxu0 %v343
  %347 = vmatprep.subr.bf16.mxu0 0
  %348 = vmatpush1.bf16.msra.mxu0 0
  %349 = vmatprep.subr.bf16.mxu0 0
  %350 = vmatpush1.bf16.msra.mxu0 0
  %351 = vmatprep.subr.bf16.mxu0 0
  %352 = vmatpush1.bf16.msra.mxu0 0
  %353 = vmatprep.subr.bf16.mxu0 0
  %354 = vmatpush1.bf16.msra.mxu0 0
  %355 = vmatprep.subr.bf16.mxu0 0
  %356 = vmatpush1.bf16.msra.mxu0 0
  %357 = vmatprep.subr.bf16.mxu0 0
  %358 = vmatpush1.bf16.msra.mxu0 0
  %359 = vmatprep.subr.bf16.mxu0 0
  %360 = vmatpush1.bf16.msra.mxu0 0
  %361 = vmatprep.subr.bf16.mxu0 0
  %362 = vmatpush1.bf16.msra.mxu0 0
  %363 = vmatprep.subr.bf16.mxu0 0
  %364 = vmatpush1.bf16.msra.mxu0 0
  %365 = vmatprep.subr.bf16.mxu0 0
  %366 = vmatpush1.bf16.msra.mxu0 0
  %367 = vmatprep.subr.bf16.mxu0 0
  %368 = vmatpush1.bf16.msra.mxu0 0
  %369 = vmatprep.subr.bf16.mxu0 0
  %370 = vmatpush1.bf16.msra.mxu0 0
  %371 = vmatprep.subr.bf16.mxu0 0
  %372 = vmatpush1.bf16.msra.mxu0 0
  %373 = vmatprep.subr.bf16.mxu0 0
  %374 = vmatpush1.bf16.msra.mxu0 0
  %375 = vmatprep.subr.bf16.mxu0 0
  %376 = vmatpush1.bf16.msra.mxu0 0
  %377 = vmatprep.mubr.bf16.mxu0 0
  %378 = vmatmul.mubr.bf16.gmra.mrb[0].mxu0 %v340
  %v379 = vpop.f32.mrb[0].mxu0
  %v380 = vadd.f32 0.0, %v379
  %v381 = vpop.f32.mrb[0].mxu0
  %v382 = vpop.f32.mrb[0].mxu0
  %v383 = vpop.f32.mrb[0].mxu0
  %384 = vdwg.mxu0
  %v385 = vadd.f32 %v335, %v380
  %v386 = vpack.c.bf16 %v93, %v93
  %s387 = scalar_lea.vmem %s5, 20
  %v388 = vld [vmem:[%s387] sm:$0xf]
  %v390 = vsel %vm130, %v388, 0
  %v393 = vsel %vm134, %v386, 0
  %395 = vmatprep.subr.bf16.mxu0 0
  %396 = vmatpush1.bf16.msra.mxu0 %v393
  %397 = vmatprep.subr.bf16.mxu0 0
  %398 = vmatpush1.bf16.msra.mxu0 0
  %399 = vmatprep.subr.bf16.mxu0 0
  %400 = vmatpush1.bf16.msra.mxu0 0
  %401 = vmatprep.subr.bf16.mxu0 0
  %402 = vmatpush1.bf16.msra.mxu0 0
  %403 = vmatprep.subr.bf16.mxu0 0
  %404 = vmatpush1.bf16.msra.mxu0 0
  %405 = vmatprep.subr.bf16.mxu0 0
  %406 = vmatpush1.bf16.msra.mxu0 0
  %407 = vmatprep.subr.bf16.mxu0 0
  %408 = vmatpush1.bf16.msra.mxu0 0
  %409 = vmatprep.subr.bf16.mxu0 0
  %410 = vmatpush1.bf16.msra.mxu0 0
  %411 = vmatprep.subr.bf16.mxu0 0
  %412 = vmatpush1.bf16.msra.mxu0 0
  %413 = vmatprep.subr.bf16.mxu0 0
  %414 = vmatpush1.bf16.msra.mxu0 0
  %415 = vmatprep.subr.bf16.mxu0 0
  %416 = vmatpush1.bf16.msra.mxu0 0
  %417 = vmatprep.subr.bf16.mxu0 0
  %418 = vmatpush1.bf16.msra.mxu0 0
  %419 = vmatprep.subr.bf16.mxu0 0
  %420 = vmatpush1.bf16.msra.mxu0 0
  %421 = vmatprep.subr.bf16.mxu0 0
  %422 = vmatpush1.bf16.msra.mxu0 0
  %423 = vmatprep.subr.bf16.mxu0 0
  %424 = vmatpush1.bf16.msra.mxu0 0
  %425 = vmatprep.subr.bf16.mxu0 0
  %426 = vmatpush1.bf16.msra.mxu0 0
  %427 = vmatprep.mubr.bf16.mxu0 0
  %428 = vmatmul.mubr.bf16.gmra.mrb[0].mxu0 %v390
  %v429 = vpop.f32.mrb[0].mxu0
  %v430 = vadd.f32 0.0, %v429
  %v431 = vpop.f32.mrb[0].mxu0
  %v432 = vpop.f32.mrb[0].mxu0
  %v433 = vpop.f32.mrb[0].mxu0
  %434 = vdwg.mxu0
  %v435 = vadd.f32 %v385, %v430
  %436 = vrot.lane.b32.xlu0 %v103, 1
  %v437 = vpop.permute.xlu0 %436
  %v438 = vsel %vm284, %v437, 0.0
  %v439 = vpack.c.bf16 %v438, %v438
  %s440 = scalar_lea.vmem %s5, 24
  %v441 = vld [vmem:[%s440] sm:$0xf]
  %v443 = vsel %vm130, %v441, 0
  %v446 = vsel %vm134, %v439, 0
  %448 = vmatprep.subr.bf16.mxu0 0
  %449 = vmatpush1.bf16.msra.mxu0 %v446
  %450 = vmatprep.subr.bf16.mxu0 0
  %451 = vmatpush1.bf16.msra.mxu0 0
  %452 = vmatprep.subr.bf16.mxu0 0
  %453 = vmatpush1.bf16.msra.mxu0 0
  %454 = vmatprep.subr.bf16.mxu0 0
  %455 = vmatpush1.bf16.msra.mxu0 0
  %456 = vmatprep.subr.bf16.mxu0 0
  %457 = vmatpush1.bf16.msra.mxu0 0
  %458 = vmatprep.subr.bf16.mxu0 0
  %459 = vmatpush1.bf16.msra.mxu0 0
  %460 = vmatprep.subr.bf16.mxu0 0
  %461 = vmatpush1.bf16.msra.mxu0 0
  %462 = vmatprep.subr.bf16.mxu0 0
  %463 = vmatpush1.bf16.msra.mxu0 0
  %464 = vmatprep.subr.bf16.mxu0 0
  %465 = vmatpush1.bf16.msra.mxu0 0
  %466 = vmatprep.subr.bf16.mxu0 0
  %467 = vmatpush1.bf16.msra.mxu0 0
  %468 = vmatprep.subr.bf16.mxu0 0
  %469 = vmatpush1.bf16.msra.mxu0 0
  %470 = vmatprep.subr.bf16.mxu0 0
  %471 = vmatpush1.bf16.msra.mxu0 0
  %472 = vmatprep.subr.bf16.mxu0 0
  %473 = vmatpush1.bf16.msra.mxu0 0
  %474 = vmatprep.subr.bf16.mxu0 0
  %475 = vmatpush1.bf16.msra.mxu0 0
  %476 = vmatprep.subr.bf16.mxu0 0
  %477 = vmatpush1.bf16.msra.mxu0 0
  %478 = vmatprep.subr.bf16.mxu0 0
  %479 = vmatpush1.bf16.msra.mxu0 0
  %480 = vmatprep.mubr.bf16.mxu0 0
  %481 = vmatmul.mubr.bf16.gmra.mrb[0].mxu0 %v443
  %v482 = vpop.f32.mrb[0].mxu0
  %v483 = vadd.f32 0.0, %v482
  %v484 = vpop.f32.mrb[0].mxu0
  %v485 = vpop.f32.mrb[0].mxu0
  %v486 = vpop.f32.mrb[0].mxu0
  %487 = vdwg.mxu0
  %v488 = vadd.f32 %v435, %v483
  %v489 = vpack.c.bf16 %v98, %v98
  %s490 = scalar_lea.vmem %s5, 28
  %v491 = vld [vmem:[%s490] sm:$0xf]
  %v493 = vsel %vm130, %v491, 0
  %v496 = vsel %vm134, %v489, 0
  %498 = vmatprep.subr.bf16.mxu0 0
  %499 = vmatpush1.bf16.msra.mxu0 %v496
  %500 = vmatprep.subr.bf16.mxu0 0
  %501 = vmatpush1.bf16.msra.mxu0 0
  %502 = vmatprep.subr.bf16.mxu0 0
  %503 = vmatpush1.bf16.msra.mxu0 0
  %504 = vmatprep.subr.bf16.mxu0 0
  %505 = vmatpush1.bf16.msra.mxu0 0
  %506 = vmatprep.subr.bf16.mxu0 0
  %507 = vmatpush1.bf16.msra.mxu0 0
  %508 = vmatprep.subr.bf16.mxu0 0
  %509 = vmatpush1.bf16.msra.mxu0 0
  %510 = vmatprep.subr.bf16.mxu0 0
  %511 = vmatpush1.bf16.msra.mxu0 0
  %512 = vmatprep.subr.bf16.mxu0 0
  %513 = vmatpush1.bf16.msra.mxu0 0
  %514 = vmatprep.subr.bf16.mxu0 0
  %515 = vmatpush1.bf16.msra.mxu0 0
  %516 = vmatprep.subr.bf16.mxu0 0
  %517 = vmatpush1.bf16.msra.mxu0 0
  %518 = vmatprep.subr.bf16.mxu0 0
  %519 = vmatpush1.bf16.msra.mxu0 0
  %520 = vmatprep.subr.bf16.mxu0 0
  %521 = vmatpush1.bf16.msra.mxu0 0
  %522 = vmatprep.subr.bf16.mxu0 0
  %523 = vmatpush1.bf16.msra.mxu0 0
  %524 = vmatprep.subr.bf16.mxu0 0
  %525 = vmatpush1.bf16.msra.mxu0 0
  %526 = vmatprep.subr.bf16.mxu0 0
  %527 = vmatpush1.bf16.msra.mxu0 0
  %528 = vmatprep.subr.bf16.mxu0 0
  %529 = vmatpush1.bf16.msra.mxu0 0
  %530 = vmatprep.mubr.bf16.mxu0 0
  %531 = vmatmul.mubr.bf16.gmra.mrb[0].mxu0 %v493
  %v532 = vpop.f32.mrb[0].mxu0
  %v533 = vadd.f32 0.0, %v532
  %v534 = vpop.f32.mrb[0].mxu0
  %v535 = vpop.f32.mrb[0].mxu0
  %v536 = vpop.f32.mrb[0].mxu0
  %537 = vdwg.mxu0
  %v538 = vadd.f32 %v488, %v533
  %v539 = vpack.c.bf16 %v103, %v103
  %s540 = scalar_lea.vmem %s5, 32
  %v541 = vld [vmem:[%s540] sm:$0xf]
  %v543 = vsel %vm130, %v541, 0
  %v546 = vsel %vm134, %v539, 0
  %548 = vmatprep.subr.bf16.mxu0 0
  %549 = vmatpush1.bf16.msra.mxu0 %v546
  %550 = vmatprep.subr.bf16.mxu0 0
  %551 = vmatpush1.bf16.msra.mxu0 0
  %552 = vmatprep.subr.bf16.mxu0 0
  %553 = vmatpush1.bf16.msra.mxu0 0
  %554 = vmatprep.subr.bf16.mxu0 0
  %555 = vmatpush1.bf16.msra.mxu0 0
  %556 = vmatprep.subr.bf16.mxu0 0
  %557 = vmatpush1.bf16.msra.mxu0 0
  %558 = vmatprep.subr.bf16.mxu0 0
  %559 = vmatpush1.bf16.msra.mxu0 0
  %560 = vmatprep.subr.bf16.mxu0 0
  %561 = vmatpush1.bf16.msra.mxu0 0
  %562 = vmatprep.subr.bf16.mxu0 0
  %563 = vmatpush1.bf16.msra.mxu0 0
  %564 = vmatprep.subr.bf16.mxu0 0
  %565 = vmatpush1.bf16.msra.mxu0 0
  %566 = vmatprep.subr.bf16.mxu0 0
  %567 = vmatpush1.bf16.msra.mxu0 0
  %568 = vmatprep.subr.bf16.mxu0 0
  %569 = vmatpush1.bf16.msra.mxu0 0
  %570 = vmatprep.subr.bf16.mxu0 0
  %571 = vmatpush1.bf16.msra.mxu0 0
  %572 = vmatprep.subr.bf16.mxu0 0
  %573 = vmatpush1.bf16.msra.mxu0 0
  %574 = vmatprep.subr.bf16.mxu0 0
  %575 = vmatpush1.bf16.msra.mxu0 0
  %576 = vmatprep.subr.bf16.mxu0 0
  %577 = vmatpush1.bf16.msra.mxu0 0
  %578 = vmatprep.subr.bf16.mxu0 0
  %579 = vmatpush1.bf16.msra.mxu0 0
  %580 = vmatprep.mubr.bf16.mxu0 0
  %581 = vmatmul.mubr.bf16.gmra.mrb[0].mxu0 %v543
  %v582 = vpop.f32.mrb[0].mxu0
  %v583 = vadd.f32 0.0, %v582
  %v584 = vpop.f32.mrb[0].mxu0
  %v585 = vpop.f32.mrb[0].mxu0
  %v586 = vpop.f32.mrb[0].mxu0
  %587 = vdwg.mxu0
  %v588 = vadd.f32 %v538, %v583
  %589 = vadd.xlane.f32.xlu0 %v588
  %v590 = vpop.xlane.xlu0 %589
  %v591 = vrcp.pop 128.0
  %v592 = vmul.f32 %v590, %v591
  %v593 = vmul.f32 %v588, %v588
  %594 = vadd.xlane.f32.xlu0 %v593
  %v595 = vpop.xlane.xlu0 %594
  %v596 = vmul.f32 %v595, %v591
  %v597 = vmul.f32 %v592, %v592
  %v598 = vsub.f32 %v596, %v597
  %v599 = vadd.f32 %v598, 1e-05
  %v600 = vrsqrt.pop %v599
  %v601 = vld [vmem:[%s6] sm:$0xff]
  %v602 = vmul.f32 %v600, %v601
  %v603 = vld [vmem:[%s7] sm:$0xff]
  %v604 = vmul.f32 %v592, %v602
  %v605 = vsub.f32 %v603, %v604
  %607 = vset.pattern.permute.xlu0 0
  %608 = vperm.xlu0 %607, %v602
  %v609 = vpop.permute.xlu0 %608
  %v611 = vmul.f32 %v588, %v609
  %613 = vset.pattern.permute.xlu0 0
  %614 = vperm.xlu0 %613, %v605
  %v615 = vpop.permute.xlu0 %614
  %v617 = vadd.f32 %v611, %v615
  %vm618 = vcmp.gt.f32.partialorder %v617, 0.0
  %v619 = vmul.f32 %v617, 0.01
  %v620 = vsel %vm618, %v617, %v619
  %621 = vrot.lane.b32.xlu0 %v620, 9
  %v622 = vpop.permute.xlu0 %621
  %v623 = vsel %vm114, %v622, 0.0
  %v624 = vpack.c.bf16 %v623, %v623
  %v625 = vld [vmem:[%s8] sm:$0xf]
  %626 = vrot.lane.b32.xlu0 %v620, 8
  %v627 = vpop.permute.xlu0 %626
  %v628 = vsel %vm125, %v627, 0.0
  %v629 = vpack.c.bf16 %v628, %v628
  %s630 = scalar_lea.vmem %s8, 4
  %v631 = vld [vmem:[%s630] sm:$0xf]
  %vm632 = vcmask 64512
  %v634 = vsel %vm632, %v631, 0
  %v637 = vsel %vm55, %v629, 0
  %639 = vmatprep.subr.bf16.mxu0 0
  %640 = vmatpush1.bf16.msra.mxu0 %v637
  %641 = vmatprep.subr.bf16.mxu0 0
  %642 = vmatpush1.bf16.msra.mxu0 0
  %643 = vmatprep.subr.bf16.mxu0 0
  %644 = vmatpush1.bf16.msra.mxu0 0
  %645 = vmatprep.subr.bf16.mxu0 0
  %646 = vmatpush1.bf16.msra.mxu0 0
  %647 = vmatprep.subr.bf16.mxu0 0
  %648 = vmatpush1.bf16.msra.mxu0 0
  %649 = vmatprep.subr.bf16.mxu0 0
  %650 = vmatpush1.bf16.msra.mxu0 0
  %651 = vmatprep.subr.bf16.mxu0 0
  %652 = vmatpush1.bf16.msra.mxu0 0
  %653 = vmatprep.subr.bf16.mxu0 0
  %654 = vmatpush1.bf16.msra.mxu0 0
  %655 = vmatprep.subr.bf16.mxu0 0
  %656 = vmatpush1.bf16.msra.mxu0 0
  %657 = vmatprep.subr.bf16.mxu0 0
  %658 = vmatpush1.bf16.msra.mxu0 0
  %659 = vmatprep.subr.bf16.mxu0 0
  %660 = vmatpush1.bf16.msra.mxu0 0
  %661 = vmatprep.subr.bf16.mxu0 0
  %662 = vmatpush1.bf16.msra.mxu0 0
  %663 = vmatprep.subr.bf16.mxu0 0
  %664 = vmatpush1.bf16.msra.mxu0 0
  %665 = vmatprep.subr.bf16.mxu0 0
  %666 = vmatpush1.bf16.msra.mxu0 0
  %667 = vmatprep.subr.bf16.mxu0 0
  %668 = vmatpush1.bf16.msra.mxu0 0
  %669 = vmatprep.subr.bf16.mxu0 0
  %670 = vmatpush1.bf16.msra.mxu0 0
  %671 = vmatprep.mubr.bf16.mxu0 0
  %672 = vmatmul.mubr.bf16.gmra.mrb[0].mxu0 %v634
  %v673 = vpop.f32.mrb[0].mxu0
  %v674 = vadd.f32 0.0, %v673
  %v675 = vpop.f32.mrb[0].mxu0
  %v676 = vpop.f32.mrb[0].mxu0
  %v677 = vpop.f32.mrb[0].mxu0
  %678 = vdwg.mxu0
  %v680 = vsel %vm632, %v625, 0
  %v683 = vsel %vm55, %v624, 0
  %685 = vmatprep.subr.bf16.mxu0 0
  %686 = vmatpush1.bf16.msra.mxu0 %v683
  %687 = vmatprep.subr.bf16.mxu0 0
  %688 = vmatpush1.bf16.msra.mxu0 0
  %689 = vmatprep.subr.bf16.mxu0 0
  %690 = vmatpush1.bf16.msra.mxu0 0
  %691 = vmatprep.subr.bf16.mxu0 0
  %692 = vmatpush1.bf16.msra.mxu0 0
  %693 = vmatprep.subr.bf16.mxu0 0
  %694 = vmatpush1.bf16.msra.mxu0 0
  %695 = vmatprep.subr.bf16.mxu0 0
  %696 = vmatpush1.bf16.msra.mxu0 0
  %697 = vmatprep.subr.bf16.mxu0 0
  %698 = vmatpush1.bf16.msra.mxu0 0
  %699 = vmatprep.subr.bf16.mxu0 0
  %700 = vmatpush1.bf16.msra.mxu0 0
  %701 = vmatprep.subr.bf16.mxu0 0
  %702 = vmatpush1.bf16.msra.mxu0 0
  %703 = vmatprep.subr.bf16.mxu0 0
  %704 = vmatpush1.bf16.msra.mxu0 0
  %705 = vmatprep.subr.bf16.mxu0 0
  %706 = vmatpush1.bf16.msra.mxu0 0
  %707 = vmatprep.subr.bf16.mxu0 0
  %708 = vmatpush1.bf16.msra.mxu0 0
  %709 = vmatprep.subr.bf16.mxu0 0
  %710 = vmatpush1.bf16.msra.mxu0 0
  %711 = vmatprep.subr.bf16.mxu0 0
  %712 = vmatpush1.bf16.msra.mxu0 0
  %713 = vmatprep.subr.bf16.mxu0 0
  %714 = vmatpush1.bf16.msra.mxu0 0
  %715 = vmatprep.subr.bf16.mxu0 0
  %716 = vmatpush1.bf16.msra.mxu0 0
  %717 = vmatprep.mubr.bf16.mxu0 0
  %718 = vmatmul.mubr.bf16.gmra.mrb[0].mxu0 %v680
  %v719 = vpop.f32.mrb[0].mxu0
  %v720 = vadd.f32 %v674, %v719
  %v721 = vpop.f32.mrb[0].mxu0
  %v722 = vpop.f32.mrb[0].mxu0
  %v723 = vpop.f32.mrb[0].mxu0
  %724 = vdwg.mxu0
  %725 = vrot.lane.b32.xlu0 %v620, 7
  %v726 = vpop.permute.xlu0 %725
  %vm727 = vcmp.lt.s32.totalorder %v37, 7
  %vm728 = vmand %vm106, %vm727
  %v729 = vsel %vm728, 1, 0
  %v730 = vlaneseq
  %v731 = vshrl.u32 %v730, 7
  %v732 = vsub.s32 0, %v731
  %v733 = vrot.slane %v729, %v732
  %vm734 = vcmp.eq.s32.totalorder %v733, 1
  %v735 = vsel %vm734, %v726, 0.0
  %v736 = vpack.c.bf16 %v735, %v735
  %s737 = scalar_lea.vmem %s8, 8
  %v738 = vld [vmem:[%s737] sm:$0xf]
  %v740 = vsel %vm632, %v738, 0
  %v743 = vsel %vm55, %v736, 0
  %745 = vmatprep.subr.bf16.mxu0 0
  %746 = vmatpush1.bf16.msra.mxu0 %v743
  %747 = vmatprep.subr.bf16.mxu0 0
  %748 = vmatpush1.bf16.msra.mxu0 0
  %749 = vmatprep.subr.bf16.mxu0 0
  %750 = vmatpush1.bf16.msra.mxu0 0
  %751 = vmatprep.subr.bf16.mxu0 0
  %752 = vmatpush1.bf16.msra.mxu0 0
  %753 = vmatprep.subr.bf16.mxu0 0
  %754 = vmatpush1.bf16.msra.mxu0 0
  %755 = vmatprep.subr.bf16.mxu0 0
  %756 = vmatpush1.bf16.msra.mxu0 0
  %757 = vmatprep.subr.bf16.mxu0 0
  %758 = vmatpush1.bf16.msra.mxu0 0
  %759 = vmatprep.subr.bf16.mxu0 0
  %760 = vmatpush1.bf16.msra.mxu0 0
  %761 = vmatprep.subr.bf16.mxu0 0
  %762 = vmatpush1.bf16.msra.mxu0 0
  %763 = vmatprep.subr.bf16.mxu0 0
  %764 = vmatpush1.bf16.msra.mxu0 0
  %765 = vmatprep.subr.bf16.mxu0 0
  %766 = vmatpush1.bf16.msra.mxu0 0
  %767 = vmatprep.subr.bf16.mxu0 0
  %768 = vmatpush1.bf16.msra.mxu0 0
  %769 = vmatprep.subr.bf16.mxu0 0
  %770 = vmatpush1.bf16.msra.mxu0 0
  %771 = vmatprep.subr.bf16.mxu0 0
  %772 = vmatpush1.bf16.msra.mxu0 0
  %773 = vmatprep.subr.bf16.mxu0 0
  %774 = vmatpush1.bf16.msra.mxu0 0
  %775 = vmatprep.subr.bf16.mxu0 0
  %776 = vmatpush1.bf16.msra.mxu0 0
  %777 = vmatprep.mubr.bf16.mxu0 0
  %778 = vmatmul.mubr.bf16.gmra.mrb[0].mxu0 %v740
  %v779 = vpop.f32.mrb[0].mxu0
  %v780 = vadd.f32 0.0, %v779
  %v781 = vpop.f32.mrb[0].mxu0
  %v782 = vpop.f32.mrb[0].mxu0
  %v783 = vpop.f32.mrb[0].mxu0
  %784 = vdwg.mxu0
  %v785 = vadd.f32 %v720, %v780
  %786 = vrot.lane.b32.xlu0 %v620, 1
  %v787 = vpop.permute.xlu0 %786
  %v788 = vsel %vm284, %v787, 0.0
  %v789 = vpack.c.bf16 %v788, %v788
  %s790 = scalar_lea.vmem %s8, 12
  %v791 = vld [vmem:[%s790] sm:$0xf]
  %v793 = vsel %vm632, %v791, 0
  %v796 = vsel %vm55, %v789, 0
  %798 = vmatprep.subr.bf16.mxu0 0
  %799 = vmatpush1.bf16.msra.mxu0 %v796
  %800 = vmatprep.subr.bf16.mxu0 0
  %801 = vmatpush1.bf16.msra.mxu0 0
  %802 = vmatprep.subr.bf16.mxu0 0
  %803 = vmatpush1.bf16.msra.mxu0 0
  %804 = vmatprep.subr.bf16.mxu0 0
  %805 = vmatpush1.bf16.msra.mxu0 0
  %806 = vmatprep.subr.bf16.mxu0 0
  %807 = vmatpush1.bf16.msra.mxu0 0
  %808 = vmatprep.subr.bf16.mxu0 0
  %809 = vmatpush1.bf16.msra.mxu0 0
  %810 = vmatprep.subr.bf16.mxu0 0
  %811 = vmatpush1.bf16.msra.mxu0 0
  %812 = vmatprep.subr.bf16.mxu0 0
  %813 = vmatpush1.bf16.msra.mxu0 0
  %814 = vmatprep.subr.bf16.mxu0 0
  %815 = vmatpush1.bf16.msra.mxu0 0
  %816 = vmatprep.subr.bf16.mxu0 0
  %817 = vmatpush1.bf16.msra.mxu0 0
  %818 = vmatprep.subr.bf16.mxu0 0
  %819 = vmatpush1.bf16.msra.mxu0 0
  %820 = vmatprep.subr.bf16.mxu0 0
  %821 = vmatpush1.bf16.msra.mxu0 0
  %822 = vmatprep.subr.bf16.mxu0 0
  %823 = vmatpush1.bf16.msra.mxu0 0
  %824 = vmatprep.subr.bf16.mxu0 0
  %825 = vmatpush1.bf16.msra.mxu0 0
  %826 = vmatprep.subr.bf16.mxu0 0
  %827 = vmatpush1.bf16.msra.mxu0 0
  %828 = vmatprep.subr.bf16.mxu0 0
  %829 = vmatpush1.bf16.msra.mxu0 0
  %830 = vmatprep.mubr.bf16.mxu0 0
  %831 = vmatmul.mubr.bf16.gmra.mrb[0].mxu0 %v793
  %v832 = vpop.f32.mrb[0].mxu0
  %v833 = vadd.f32 0.0, %v832
  %v834 = vpop.f32.mrb[0].mxu0
  %v835 = vpop.f32.mrb[0].mxu0
  %v836 = vpop.f32.mrb[0].mxu0
  %837 = vdwg.mxu0
  %v838 = vadd.f32 %v785, %v833
  %v839 = vpack.c.bf16 %v620, %v620
  %s840 = scalar_lea.vmem %s8, 16
  %v841 = vld [vmem:[%s840] sm:$0xf]
  %v843 = vsel %vm632, %v841, 0
  %v846 = vsel %vm55, %v839, 0
  %848 = vmatprep.subr.bf16.mxu0 0
  %849 = vmatpush1.bf16.msra.mxu0 %v846
  %850 = vmatprep.subr.bf16.mxu0 0
  %851 = vmatpush1.bf16.msra.mxu0 0
  %852 = vmatprep.subr.bf16.mxu0 0
  %853 = vmatpush1.bf16.msra.mxu0 0
  %854 = vmatprep.subr.bf16.mxu0 0
  %855 = vmatpush1.bf16.msra.mxu0 0
  %856 = vmatprep.subr.bf16.mxu0 0
  %857 = vmatpush1.bf16.msra.mxu0 0
  %858 = vmatprep.subr.bf16.mxu0 0
  %859 = vmatpush1.bf16.msra.mxu0 0
  %860 = vmatprep.subr.bf16.mxu0 0
  %861 = vmatpush1.bf16.msra.mxu0 0
  %862 = vmatprep.subr.bf16.mxu0 0
  %863 = vmatpush1.bf16.msra.mxu0 0
  %864 = vmatprep.subr.bf16.mxu0 0
  %865 = vmatpush1.bf16.msra.mxu0 0
  %866 = vmatprep.subr.bf16.mxu0 0
  %867 = vmatpush1.bf16.msra.mxu0 0
  %868 = vmatprep.subr.bf16.mxu0 0
  %869 = vmatpush1.bf16.msra.mxu0 0
  %870 = vmatprep.subr.bf16.mxu0 0
  %871 = vmatpush1.bf16.msra.mxu0 0
  %872 = vmatprep.subr.bf16.mxu0 0
  %873 = vmatpush1.bf16.msra.mxu0 0
  %874 = vmatprep.subr.bf16.mxu0 0
  %875 = vmatpush1.bf16.msra.mxu0 0
  %876 = vmatprep.subr.bf16.mxu0 0
  %877 = vmatpush1.bf16.msra.mxu0 0
  %878 = vmatprep.subr.bf16.mxu0 0
  %879 = vmatpush1.bf16.msra.mxu0 0
  %880 = vmatprep.mubr.bf16.mxu0 0
  %881 = vmatmul.mubr.bf16.gmra.mrb[0].mxu0 %v843
  %v882 = vpop.f32.mrb[0].mxu0
  %v883 = vadd.f32 0.0, %v882
  %v884 = vpop.f32.mrb[0].mxu0
  %v885 = vpop.f32.mrb[0].mxu0
  %v886 = vpop.f32.mrb[0].mxu0
  %887 = vdwg.mxu0
  %v888 = vadd.f32 %v838, %v883
  %889 = vrot.lane.b32.xlu0 %v620, 127
  %v890 = vpop.permute.xlu0 %889
  %v891 = vsel %vm727, 1, 0
  %v892 = vlaneseq
  %v893 = vshrl.u32 %v892, 7
  %v894 = vsub.s32 0, %v893
  %v895 = vrot.slane %v891, %v894
  %vm896 = vcmp.eq.s32.totalorder %v895, 1
  %v897 = vsel %vm896, %v890, 0.0
  %v898 = vpack.c.bf16 %v897, %v897
  %s899 = scalar_lea.vmem %s8, 20
  %v900 = vld [vmem:[%s899] sm:$0xf]
  %v902 = vsel %vm632, %v900, 0
  %v905 = vsel %vm55, %v898, 0
  %907 = vmatprep.subr.bf16.mxu0 0
  %908 = vmatpush1.bf16.msra.mxu0 %v905
  %909 = vmatprep.subr.bf16.mxu0 0
  %910 = vmatpush1.bf16.msra.mxu0 0
  %911 = vmatprep.subr.bf16.mxu0 0
  %912 = vmatpush1.bf16.msra.mxu0 0
  %913 = vmatprep.subr.bf16.mxu0 0
  %914 = vmatpush1.bf16.msra.mxu0 0
  %915 = vmatprep.subr.bf16.mxu0 0
  %916 = vmatpush1.bf16.msra.mxu0 0
  %917 = vmatprep.subr.bf16.mxu0 0
  %918 = vmatpush1.bf16.msra.mxu0 0
  %919 = vmatprep.subr.bf16.mxu0 0
  %920 = vmatpush1.bf16.msra.mxu0 0
  %921 = vmatprep.subr.bf16.mxu0 0
  %922 = vmatpush1.bf16.msra.mxu0 0
  %923 = vmatprep.subr.bf16.mxu0 0
  %924 = vmatpush1.bf16.msra.mxu0 0
  %925 = vmatprep.subr.bf16.mxu0 0
  %926 = vmatpush1.bf16.msra.mxu0 0
  %927 = vmatprep.subr.bf16.mxu0 0
  %928 = vmatpush1.bf16.msra.mxu0 0
  %929 = vmatprep.subr.bf16.mxu0 0
  %930 = vmatpush1.bf16.msra.mxu0 0
  %931 = vmatprep.subr.bf16.mxu0 0
  %932 = vmatpush1.bf16.msra.mxu0 0
  %933 = vmatprep.subr.bf16.mxu0 0
  %934 = vmatpush1.bf16.msra.mxu0 0
  %935 = vmatprep.subr.bf16.mxu0 0
  %936 = vmatpush1.bf16.msra.mxu0 0
  %937 = vmatprep.subr.bf16.mxu0 0
  %938 = vmatpush1.bf16.msra.mxu0 0
  %939 = vmatprep.mubr.bf16.mxu0 0
  %940 = vmatmul.mubr.bf16.gmra.mrb[0].mxu0 %v902
  %v941 = vpop.f32.mrb[0].mxu0
  %v942 = vadd.f32 0.0, %v941
  %v943 = vpop.f32.mrb[0].mxu0
  %v944 = vpop.f32.mrb[0].mxu0
  %v945 = vpop.f32.mrb[0].mxu0
  %946 = vdwg.mxu0
  %v947 = vadd.f32 %v888, %v942
  %948 = vrot.lane.b32.xlu0 %v620, 121
  %v949 = vpop.permute.xlu0 %948
  %vm950 = vcmp.lt.s32.totalorder %v36, 7
  %vm951 = vmand %vm950, %vm107
  %v952 = vsel %vm951, 1, 0
  %v953 = vlaneseq
  %v954 = vshrl.u32 %v953, 7
  %v955 = vsub.s32 0, %v954
  %v956 = vrot.slane %v952, %v955
  %vm957 = vcmp.eq.s32.totalorder %v956, 1
  %v958 = vsel %vm957, %v949, 0.0
  %v959 = vpack.c.bf16 %v958, %v958
  %s960 = scalar_lea.vmem %s8, 24
  %v961 = vld [vmem:[%s960] sm:$0xf]
  %v963 = vsel %vm632, %v961, 0
  %v966 = vsel %vm55, %v959, 0
  %968 = vmatprep.subr.bf16.mxu0 0
  %969 = vmatpush1.bf16.msra.mxu0 %v966
  %970 = vmatprep.subr.bf16.mxu0 0
  %971 = vmatpush1.bf16.msra.mxu0 0
  %972 = vmatprep.subr.bf16.mxu0 0
  %973 = vmatpush1.bf16.msra.mxu0 0
  %974 = vmatprep.subr.bf16.mxu0 0
  %975 = vmatpush1.bf16.msra.mxu0 0
  %976 = vmatprep.subr.bf16.mxu0 0
  %977 = vmatpush1.bf16.msra.mxu0 0
  %978 = vmatprep.subr.bf16.mxu0 0
  %979 = vmatpush1.bf16.msra.mxu0 0
  %980 = vmatprep.subr.bf16.mxu0 0
  %981 = vmatpush1.bf16.msra.mxu0 0
  %982 = vmatprep.subr.bf16.mxu0 0
  %983 = vmatpush1.bf16.msra.mxu0 0
  %984 = vmatprep.subr.bf16.mxu0 0
  %985 = vmatpush1.bf16.msra.mxu0 0
  %986 = vmatprep.subr.bf16.mxu0 0
  %987 = vmatpush1.bf16.msra.mxu0 0
  %988 = vmatprep.subr.bf16.mxu0 0
  %989 = vmatpush1.bf16.msra.mxu0 0
  %990 = vmatprep.subr.bf16.mxu0 0
  %991 = vmatpush1.bf16.msra.mxu0 0
  %992 = vmatprep.subr.bf16.mxu0 0
  %993 = vmatpush1.bf16.msra.mxu0 0
  %994 = vmatprep.subr.bf16.mxu0 0
  %995 = vmatpush1.bf16.msra.mxu0 0
  %996 = vmatprep.subr.bf16.mxu0 0
  %997 = vmatpush1.bf16.msra.mxu0 0
  %998 = vmatprep.subr.bf16.mxu0 0
  %999 = vmatpush1.bf16.msra.mxu0 0
  %1000 = vmatprep.mubr.bf16.mxu0 0
  %1001 = vmatmul.mubr.bf16.gmra.mrb[0].mxu0 %v963
  %v1002 = vpop.f32.mrb[0].mxu0
  %v1003 = vadd.f32 0.0, %v1002
  %v1004 = vpop.f32.mrb[0].mxu0
  %v1005 = vpop.f32.mrb[0].mxu0
  %v1006 = vpop.f32.mrb[0].mxu0
  %1007 = vdwg.mxu0
  %v1008 = vadd.f32 %v947, %v1003
  %1009 = vrot.lane.b32.xlu0 %v620, 120
  %v1010 = vpop.permute.xlu0 %1009
  %v1011 = vsel %vm950, 1, 0
  %v1012 = vlaneseq
  %v1013 = vshrl.u32 %v1012, 7
  %v1014 = vsub.s32 0, %v1013
  %v1015 = vrot.slane %v1011, %v1014
  %vm1016 = vcmp.eq.s32.totalorder %v1015, 1
  %v1017 = vsel %vm1016, %v1010, 0.0
  %v1018 = vpack.c.bf16 %v1017, %v1017
  %s1019 = scalar_lea.vmem %s8, 28
  %v1020 = vld [vmem:[%s1019] sm:$0xf]
  %v1022 = vsel %vm632, %v1020, 0
  %v1025 = vsel %vm55, %v1018, 0
  %1027 = vmatprep.subr.bf16.mxu0 0
  %1028 = vmatpush1.bf16.msra.mxu0 %v1025
  %1029 = vmatprep.subr.bf16.mxu0 0
  %1030 = vmatpush1.bf16.msra.mxu0 0
  %1031 = vmatprep.subr.bf16.mxu0 0
  %1032 = vmatpush1.bf16.msra.mxu0 0
  %1033 = vmatprep.subr.bf16.mxu0 0
  %1034 = vmatpush1.bf16.msra.mxu0 0
  %1035 = vmatprep.subr.bf16.mxu0 0
  %1036 = vmatpush1.bf16.msra.mxu0 0
  %1037 = vmatprep.subr.bf16.mxu0 0
  %1038 = vmatpush1.bf16.msra.mxu0 0
  %1039 = vmatprep.subr.bf16.mxu0 0
  %1040 = vmatpush1.bf16.msra.mxu0 0
  %1041 = vmatprep.subr.bf16.mxu0 0
  %1042 = vmatpush1.bf16.msra.mxu0 0
  %1043 = vmatprep.subr.bf16.mxu0 0
  %1044 = vmatpush1.bf16.msra.mxu0 0
  %1045 = vmatprep.subr.bf16.mxu0 0
  %1046 = vmatpush1.bf16.msra.mxu0 0
  %1047 = vmatprep.subr.bf16.mxu0 0
  %1048 = vmatpush1.bf16.msra.mxu0 0
  %1049 = vmatprep.subr.bf16.mxu0 0
  %1050 = vmatpush1.bf16.msra.mxu0 0
  %1051 = vmatprep.subr.bf16.mxu0 0
  %1052 = vmatpush1.bf16.msra.mxu0 0
  %1053 = vmatprep.subr.bf16.mxu0 0
  %1054 = vmatpush1.bf16.msra.mxu0 0
  %1055 = vmatprep.subr.bf16.mxu0 0
  %1056 = vmatpush1.bf16.msra.mxu0 0
  %1057 = vmatprep.subr.bf16.mxu0 0
  %1058 = vmatpush1.bf16.msra.mxu0 0
  %1059 = vmatprep.mubr.bf16.mxu0 0
  %1060 = vmatmul.mubr.bf16.gmra.mrb[0].mxu0 %v1022
  %v1061 = vpop.f32.mrb[0].mxu0
  %v1062 = vadd.f32 0.0, %v1061
  %v1063 = vpop.f32.mrb[0].mxu0
  %v1064 = vpop.f32.mrb[0].mxu0
  %v1065 = vpop.f32.mrb[0].mxu0
  %1066 = vdwg.mxu0
  %v1067 = vadd.f32 %v1008, %v1062
  %1068 = vrot.lane.b32.xlu0 %v620, 119
  %v1069 = vpop.permute.xlu0 %1068
  %vm1070 = vmand %vm950, %vm727
  %v1071 = vsel %vm1070, 1, 0
  %v1072 = vlaneseq
  %v1073 = vshrl.u32 %v1072, 7
  %v1074 = vsub.s32 0, %v1073
  %v1075 = vrot.slane %v1071, %v1074
  %vm1076 = vcmp.eq.s32.totalorder %v1075, 1
  %v1077 = vsel %vm1076, %v1069, 0.0
  %v1078 = vpack.c.bf16 %v1077, %v1077
  %s1079 = scalar_lea.vmem %s8, 32
  %v1080 = vld [vmem:[%s1079] sm:$0xf]
  %v1082 = vsel %vm632, %v1080, 0
  %v1085 = vsel %vm55, %v1078, 0
  %1087 = vmatprep.subr.bf16.mxu0 0
  %1088 = vmatpush1.bf16.msra.mxu0 %v1085
  %1089 = vmatprep.subr.bf16.mxu0 0
  %1090 = vmatpush1.bf16.msra.mxu0 0
  %1091 = vmatprep.subr.bf16.mxu0 0
  %1092 = vmatpush1.bf16.msra.mxu0 0
  %1093 = vmatprep.subr.bf16.mxu0 0
  %1094 = vmatpush1.bf16.msra.mxu0 0
  %1095 = vmatprep.subr.bf16.mxu0 0
  %1096 = vmatpush1.bf16.msra.mxu0 0
  %1097 = vmatprep.subr.bf16.mxu0 0
  %1098 = vmatpush1.bf16.msra.mxu0 0
  %1099 = vmatprep.subr.bf16.mxu0 0
  %1100 = vmatpush1.bf16.msra.mxu0 0
  %1101 = vmatprep.subr.bf16.mxu0 0
  %1102 = vmatpush1.bf16.msra.mxu0 0
  %1103 = vmatprep.subr.bf16.mxu0 0
  %1104 = vmatpush1.bf16.msra.mxu0 0
  %1105 = vmatprep.subr.bf16.mxu0 0
  %1106 = vmatpush1.bf16.msra.mxu0 0
  %1107 = vmatprep.subr.bf16.mxu0 0
  %1108 = vmatpush1.bf16.msra.mxu0 0
  %1109 = vmatprep.subr.bf16.mxu0 0
  %1110 = vmatpush1.bf16.msra.mxu0 0
  %1111 = vmatprep.subr.bf16.mxu0 0
  %1112 = vmatpush1.bf16.msra.mxu0 0
  %1113 = vmatprep.subr.bf16.mxu0 0
  %1114 = vmatpush1.bf16.msra.mxu0 0
  %1115 = vmatprep.subr.bf16.mxu0 0
  %1116 = vmatpush1.bf16.msra.mxu0 0
  %1117 = vmatprep.subr.bf16.mxu0 0
  %1118 = vmatpush1.bf16.msra.mxu0 0
  %1119 = vmatprep.mubr.bf16.mxu0 0
  %1120 = vmatmul.mubr.bf16.gmra.mrb[0].mxu0 %v1082
  %v1121 = vpop.f32.mrb[0].mxu0
  %v1122 = vadd.f32 0.0, %v1121
  %v1123 = vpop.f32.mrb[0].mxu0
  %v1124 = vpop.f32.mrb[0].mxu0
  %v1125 = vpop.f32.mrb[0].mxu0
  %1126 = vdwg.mxu0
  %v1127 = vadd.f32 %v1067, %v1122
  %v1128 = vld [vmem:[%s9] sm:$0xf]
  %v1130 = vsel %vm130, %v1128, 0
  %1132 = vmatprep.subr.bf16.mxu0 0
  %1133 = vmatpush1.bf16.msra.mxu0 %v343
  %1134 = vmatprep.subr.bf16.mxu0 0
  %1135 = vmatpush1.bf16.msra.mxu0 0
  %1136 = vmatprep.subr.bf16.mxu0 0
  %1137 = vmatpush1.bf16.msra.mxu0 0
  %1138 = vmatprep.subr.bf16.mxu0 0
  %1139 = vmatpush1.bf16.msra.mxu0 0
  %1140 = vmatprep.subr.bf16.mxu0 0
  %1141 = vmatpush1.bf16.msra.mxu0 0
  %1142 = vmatprep.subr.bf16.mxu0 0
  %1143 = vmatpush1.bf16.msra.mxu0 0
  %1144 = vmatprep.subr.bf16.mxu0 0
  %1145 = vmatpush1.bf16.msra.mxu0 0
  %1146 = vmatprep.subr.bf16.mxu0 0
  %1147 = vmatpush1.bf16.msra.mxu0 0
  %1148 = vmatprep.subr.bf16.mxu0 0
  %1149 = vmatpush1.bf16.msra.mxu0 0
  %1150 = vmatprep.subr.bf16.mxu0 0
  %1151 = vmatpush1.bf16.msra.mxu0 0
  %1152 = vmatprep.subr.bf16.mxu0 0
  %1153 = vmatpush1.bf16.msra.mxu0 0
  %1154 = vmatprep.subr.bf16.mxu0 0
  %1155 = vmatpush1.bf16.msra.mxu0 0
  %1156 = vmatprep.subr.bf16.mxu0 0
  %1157 = vmatpush1.bf16.msra.mxu0 0
  %1158 = vmatprep.subr.bf16.mxu0 0
  %1159 = vmatpush1.bf16.msra.mxu0 0
  %1160 = vmatprep.subr.bf16.mxu0 0
  %1161 = vmatpush1.bf16.msra.mxu0 0
  %1162 = vmatprep.subr.bf16.mxu0 0
  %1163 = vmatpush1.bf16.msra.mxu0 0
  %1164 = vmatprep.mubr.bf16.mxu0 0
  %1165 = vmatmul.mubr.bf16.gmra.mrb[0].mxu0 %v1130
  %v1166 = vpop.f32.mrb[0].mxu0
  %v1167 = vadd.f32 0.0, %v1166
  %v1168 = vpop.f32.mrb[0].mxu0
  %v1169 = vpop.f32.mrb[0].mxu0
  %v1170 = vpop.f32.mrb[0].mxu0
  %1171 = vdwg.mxu0
  %v1172 = vadd.f32 %v1127, %v1167
  %1173 = vst [vmem:[%s10] sm:$0xff] %v1172
  // Predicated region
  $region42: #{res_layer_forward.1} parent=0 // pred_check
    _
  $region43: #{res_layer_forward.1} parent=0 // pred_check_branch
    %1175 = sbr.rel (0) target = $region45
  $region44: #{res_layer_forward.1} parent=0 // pred_region
    _
  $region45: #{res_layer_forward.1} parent=0 // pred_fallthru
    _
  // Predicated region
  $region46: #{res_layer_forward.1} parent=0 // pred_check
    _
  $region47: #{res_layer_forward.1} parent=0 // pred_check_branch
    %1177 = sbr.rel (0) target = $region49
  $region48: #{res_layer_forward.1} parent=0 // pred_region
    _
  $region49: #{res_layer_forward.1} parent=0 // pred_fallthru
    _

</llo_original>
